<compile_context>
chip_gen: v5e
topology: v5e:2x2
jax: 0.10.0
libtpu: 0.0.40
codegen_flags: <defaults>
</compile_context>

<pallas_src>
import math

import jax
import jax.numpy as jnp
from jax.experimental import pallas as pl
from jax.experimental.pallas import tpu as pltpu

_LOG_2PI = math.log(2.0 * math.pi)


# ------------------------------- Pallas kernel -------------------------------

def _small_k_matmul(x, w):
    """x: [..., K] @ w: [K, N] with tiny static K -> VPU broadcast-MACs (skip MXU)."""
    K = w.shape[0]
    acc = x[..., 0:1] * w[0:1, :]
    for j in range(1, K):
        acc = acc + x[..., j:j + 1] * w[j:j + 1, :]
    return acc


def _cnp_kernel(ctx_ref, xt_ref, yt_ref,
                ew0f_ref, eb0f_ref, ewhf_ref, ebhf_ref,
                dw0e_ref, dw0x_ref, db0_ref,
                dw1_ref, db1_ref, dw2_ref, db2_ref,
                ll_ref):
    f32 = jnp.float32
    ctx = ctx_ref[0]                     # [TB, Nc, dim_x + dim_y]
    xt = xt_ref[0]                       # [TB, Nt, dim_x]
    yt = yt_ref[0]                       # [TB, Nt, dim_y]
    TB, Nc, din = ctx.shape
    Nt = xt.shape[1]
    dim_y = yt.shape[-1]

    # ---- both PoolingEncoders fused into one block-diagonal 2H-wide MLP -------
    ctx2 = ctx.reshape(TB * Nc, din)                                       # tile-aligned merge
    h = _small_k_matmul(ctx2, ew0f_ref[...]) + eb0f_ref[...]               # [TB*Nc, 2H], pre layer 1
    h = jnp.maximum(h, 0.0)
    for l in range(2):                                                     # pre layers 2, 3
        h = jnp.dot(h, ewhf_ref[l], preferred_element_type=f32) + ebhf_ref[l]
        h = jnp.maximum(h, 0.0)
    h = jnp.dot(h, ewhf_ref[2], preferred_element_type=f32) + ebhf_ref[2]  # pre layer 4 (no ReLU)
    H2 = h.shape[-1]
    pooled = jnp.mean(h.reshape(TB, Nc, H2), axis=1)                       # per-batch mean pool -> [TB, 2H]
    p = jnp.dot(pooled, ewhf_ref[3], preferred_element_type=f32) + ebhf_ref[3]   # post layer 1
    p = jnp.maximum(p, 0.0)
    encoded = jnp.dot(p, ewhf_ref[4], preferred_element_type=f32) + ebhf_ref[4]  # [TB, 2H] == cat(enc1, enc2)

    # ---- decoder --------------------------------------------------------------
    # fc(cat[encoded, xt]) == xt @ W_x + (encoded @ W_e + b): the encoded part is one
    # [TB, H] row-block broadcast over each batch element's Nt target points.
    row = jnp.dot(encoded, dw0e_ref[...], preferred_element_type=f32) + db0_ref[...]  # [TB, H]
    hid = _small_k_matmul(xt, dw0x_ref[...]) + row[:, None, :]             # [TB, Nt, H]
    hid = jnp.maximum(hid, 0.0).reshape(TB * Nt, row.shape[-1])            # tile-aligned merge
    hid = jnp.dot(hid, dw1_ref[...], preferred_element_type=f32) + db1_ref[...]
    hid = jnp.maximum(hid, 0.0)
    out = jnp.dot(hid, dw2_ref[...], preferred_element_type=f32) + db2_ref[...]       # [TB*Nt, 2*dim_y]
    out = out.reshape(TB, Nt, 2 * dim_y)

    # ---- Normal log-prob epilogue ---------------------------------------------
    # TODO(synk): for very large Nt the epilogue could be transposed so points sit
    # on lanes; at these widths it is negligible.
    mu = out[..., :dim_y]
    sraw = out[..., dim_y:]
    softplus = jnp.maximum(sraw, 0.0) + jnp.log1p(jnp.exp(-jnp.abs(sraw)))
    sigma = 0.1 + 0.9 * softplus
    z = (yt - mu) / sigma
    ll = -0.5 * z * z - jnp.log(sigma) - 0.5 * _LOG_2PI                    # [TB, Nt, dim_y]
    ll_ref[0] = jnp.sum(ll, axis=-1)                                       # lane-dense [TB, Nt] store


# ------------------------------ module wrapper --------------------------------

def _choose_tb(B, Nc, Nt, rows_target=256, max_rows=2048):
    """Batch-tile size: enough rows per grid step to feed the MXU, >= 2 grid steps
    when possible (v7x megacore), bounded per-step VMEM footprint."""
    best = 1
    for tb in range(1, B + 1):
        if B % tb:
            continue
        if B >= 2 and B // tb < 2:        # keep both v7x TensorCores busy
            continue
        if tb * max(Nc, Nt) > max_rows:   # VMEM guard (v7x: 64 MiB physical)
            continue
        best = tb
        if tb * min(Nc, Nt) >= rows_target:
            break
    return best


def cnp_log_likelihood(kparams, xc, yc, xt, yt):
    """Per-point log p(yt | xc, yc, xt) under the CNP predictive. Returns [B, Nt]."""
    B, Nc, dim_x = xc.shape
    dim_y = yc.shape[-1]
    Nt = xt.shape[1]

    TB = _choose_tb(B, Nc, Nt)
    G = B // TB

    # group TB batch elements per grid step (free metadata reshapes in XLA)
    ctx = jnp.concatenate([xc, yc], axis=-1).reshape(G, TB, Nc, dim_x + dim_y)
    xt_g = xt.reshape(G, TB, Nt, dim_x)
    yt_g = yt.reshape(G, TB, Nt, dim_y)

    def data_spec(shape):
        return pl.BlockSpec((1,) + shape, lambda g, _n=len(shape): (g,) + (0,) * _n)

    def weight_spec(a):
        zeros = (0,) * a.ndim
        return pl.BlockSpec(a.shape, lambda g, _z=zeros: _z)   # grid-invariant resident

    weights = (kparams["ew0f"], kparams["eb0f"], kparams["ewhf"], kparams["ebhf"],
               kparams["dw0e"], kparams["dw0x"], kparams["db0"],
               kparams["dw1"], kparams["db1"], kparams["dw2"], kparams["db2"])

    ll = pl.pallas_call(
        _cnp_kernel,
        out_shape=jax.ShapeDtypeStruct((G, TB, Nt), jnp.float32),
        grid=(G,),
        in_specs=[data_spec((TB, Nc, dim_x + dim_y)),
                  data_spec((TB, Nt, dim_x)),
                  data_spec((TB, Nt, dim_y))] + [weight_spec(w) for w in weights],
        out_specs=pl.BlockSpec((1, TB, Nt), lambda g: (g, 0, 0)),
        compiler_params=pltpu.CompilerParams(dimension_semantics=("parallel",)),
    )(ctx, xt_g, yt_g, *weights)
    return ll.reshape(B, Nt)


def cnp_forward(kparams, batch, training=False, reduce_ll=True):
    """Mirrors CNP.forward: returns {'loss'} when training, else {'ctx_ll','tar_ll'}."""
    ll = cnp_log_likelihood(kparams, batch["context_x"], batch["context_y"],
                            batch["x_values"], batch["y_values"])
    outs = {}
    if training:
        outs["loss"] = -ll.mean(-1).mean()
    else:
        # contract (matches the PyTorch dataloader): x_values lists the Nc context points first
        nc = batch["context_x"].shape[-2]
        if reduce_ll:
            outs["ctx_ll"] = ll[..., :nc].mean(-1).mean()
            outs["tar_ll"] = ll[..., nc:].mean(-1).mean()
        else:
            outs["ctx_ll"] = ll[..., :nc]
            outs["tar_ll"] = ll[..., nc:]
    return outs


# --------------------------------- parameters ---------------------------------

def init_params(key, dim_x=1, dim_y=1, dim_hid=128):
    """Per-module parameters, mirroring the PyTorch layout (unfused)."""
    H = dim_hid
    din = dim_x + dim_y
    it = iter(jax.random.split(key, 64))

    def linear(fan_in, fan_out):
        s = 1.0 / math.sqrt(fan_in)
        w = jax.random.uniform(next(it), (fan_in, fan_out), jnp.float32, -s, s)
        b = jax.random.uniform(next(it), (fan_out,), jnp.float32, -s, s)
        return w, b

    ew0, eb0, ewh, ebh = [], [], [], []
    for _ in range(2):                       # enc1, enc2 (PoolingEncoder)
        w_in, b_in = linear(din, H)          # pre layer 1
        ws, bs = [], []
        for _ in range(5):                   # pre L2, pre L3, pre L4, post L1, post L2
            w, b = linear(H, H)
            ws.append(w)
            bs.append(b)
        ew0.append(w_in)
        eb0.append(b_in)
        ewh.append(jnp.stack(ws))
        ebh.append(jnp.stack(bs))

    wfc, bfc = linear(2 * H + dim_x, H)      # Decoder.fc, input order is cat[encoded, x]
    wd1, bd1 = linear(H, H)                  # Decoder.mlp Linear 1
    wd2, bd2 = linear(H, 2 * dim_y)          # Decoder.mlp Linear 2

    return dict(ew0=jnp.stack(ew0),          # [2, din, H]
                eb0=jnp.stack(eb0),          # [2, H]
                ewh=jnp.stack(ewh),          # [2, 5, H, H]
                ebh=jnp.stack(ebh),          # [2, 5, H]
                wfc=wfc, bfc=bfc, wd1=wd1, bd1=bd1, wd2=wd2, bd2=bd2)


def fuse_params(params):
    """Build kernel-ready fused weights: the two encoders become one block-diagonal
    2H-wide MLP (fills the 256-wide MXU on v6e/v7x; concat of encodings comes free)."""
    ew0, eb0, ewh, ebh = params["ew0"], params["eb0"], params["ewh"], params["ebh"]
    H = ewh.shape[-1]
    L = ewh.shape[1]
    ewhf = jnp.zeros((L, 2 * H, 2 * H), ewh.dtype)
    ewhf = ewhf.at[:, :H, :H].set(ewh[0]).at[:, H:, H:].set(ewh[1])
    wfc = params["wfc"]
    return dict(
        ew0f=jnp.concatenate([ew0[0], ew0[1]], axis=-1),               # [din, 2H]
        eb0f=jnp.concatenate([eb0[0], eb0[1]], axis=-1)[None, :],      # [1, 2H]
        ewhf=ewhf,                                                     # [5, 2H, 2H] block-diag
        ebhf=jnp.concatenate([ebh[0], ebh[1]], axis=-1)[:, None, :],   # [5, 1, 2H]
        dw0e=wfc[:2 * H],                                              # rows multiplying `encoded`
        dw0x=wfc[2 * H:],                                              # rows multiplying x
        db0=params["bfc"][None, :],
        dw1=params["wd1"], db1=params["bd1"][None, :],
        dw2=params["wd2"], db2=params["bd2"][None, :],
    )


# ------------------------------ pure-JAX reference -----------------------------

def reference_log_likelihood(params, xc, yc, xt, yt):
    relu = jax.nn.relu
    ctx = jnp.concatenate([xc, yc], -1)
    encs = []
    for e in range(2):
        h = relu(ctx @ params["ew0"][e] + params["eb0"][e])
        h = relu(h @ params["ewh"][e, 0] + params["ebh"][e, 0])
        h = relu(h @ params["ewh"][e, 1] + params["ebh"][e, 1])
        h = h @ params["ewh"][e, 2] + params["ebh"][e, 2]
        p = h.mean(-2)
        p = relu(p @ params["ewh"][e, 3] + params["ebh"][e, 3])
        p = p @ params["ewh"][e, 4] + params["ebh"][e, 4]
        encs.append(p)
    encoded = jnp.concatenate(encs, -1)                               # [B, 2H]
    B, Nt, _ = xt.shape
    enc_b = jnp.broadcast_to(encoded[:, None, :], (B, Nt, encoded.shape[-1]))
    packed = jnp.concatenate([enc_b, xt], -1)                         # [B, Nt, 2H + dim_x]
    h = relu(packed @ params["wfc"] + params["bfc"])
    h = relu(h @ params["wd1"] + params["bd1"])
    out = h @ params["wd2"] + params["bd2"]
    dim_y = yt.shape[-1]
    mu, sraw = out[..., :dim_y], out[..., dim_y:]
    sigma = 0.1 + 0.9 * jax.nn.softplus(sraw)
    ll = -0.5 * ((yt - mu) / sigma) ** 2 - jnp.log(sigma) - 0.5 * _LOG_2PI
    return ll.sum(-1)


# ----------------------------------- main --------------------------------------

if __name__ == "__main__":
    dim_x, dim_y, dim_hid = 1, 1, 128      # CNP defaults
    B, Nc, Nt = 8, 8, 16                   # x_values includes the Nc context points first
    # -> TB = 4 batch elements per grid step, grid = (2,) so both v7x cores get work

    key = jax.random.PRNGKey(0)
    kparam, kx, knoise = jax.random.split(key, 3)
    params = init_params(kparam, dim_x, dim_y, dim_hid)
    kparams = fuse_params(params)

    x_values = jax.random.normal(kx, (B, Nt, dim_x), jnp.float32)
    y_values = jnp.sin(3.0 * x_values[..., :dim_y]) + \
        0.1 * jax.random.normal(knoise, (B, Nt, dim_y), jnp.float32)
    context_x, context_y = x_values[:, :Nc], y_values[:, :Nc]

    ll = cnp_log_likelihood(kparams, context_x, context_y, x_values, y_values)
    ll = jax.block_until_ready(ll)

    ll_ref = reference_log_likelihood(params, context_x, context_y, x_values, y_values)
    err = jnp.max(jnp.abs(ll - ll_ref))
    assert ll.shape == (B, Nt)
    assert jnp.allclose(ll, ll_ref, atol=1e-3, rtol=1e-3), f"max abs err = {err}"

    # eval-mode outputs (CNP.forward with training=False, reduce_ll=True) + loss
    batch = dict(context_x=context_x, context_y=context_y,
                 x_values=x_values, y_values=y_values)
    outs = cnp_forward(kparams, batch, training=False, reduce_ll=True)
    outs["loss"] = -ll.mean(-1).mean()
    jax.block_until_ready(outs["tar_ll"])

    print("KERNEL_OK")
</pallas_src>

<mosaic_0001>
module attributes {stable_mosaic.version = 11 : i64} {
  func.func @_cnp_kernel(%arg0: i32, %arg1: memref<1x4x8x2xf32, #tpu.memory_space<vmem>>, %arg2: memref<1x4x16x1xf32, #tpu.memory_space<vmem>>, %arg3: memref<1x4x16x1xf32, #tpu.memory_space<vmem>>, %arg4: memref<2x256xf32, #tpu.memory_space<vmem>>, %arg5: memref<1x256xf32, #tpu.memory_space<vmem>>, %arg6: memref<5x256x256xf32, #tpu.memory_space<vmem>>, %arg7: memref<5x1x256xf32, #tpu.memory_space<vmem>>, %arg8: memref<256x128xf32, #tpu.memory_space<vmem>>, %arg9: memref<1x128xf32, #tpu.memory_space<vmem>>, %arg10: memref<1x128xf32, #tpu.memory_space<vmem>>, %arg11: memref<128x128xf32, #tpu.memory_space<vmem>>, %arg12: memref<1x128xf32, #tpu.memory_space<vmem>>, %arg13: memref<128x2xf32, #tpu.memory_space<vmem>>, %arg14: memref<1x2xf32, #tpu.memory_space<vmem>>, %arg15: memref<1x4x16xf32, #tpu.memory_space<vmem>>) attributes {dimension_semantics = [#tpu.dimension_semantics<parallel>], iteration_bounds = array<i64: 2>, scalar_prefetch = 0 : i64, scratch_operands = 0 : i64, tpu.core_type = #tpu.core_type<tc>, window_params = [{transform_indices = @transform_0, window_bounds = array<i64: 1, 4, 8, 2>}, {transform_indices = @transform_1, window_bounds = array<i64: 1, 4, 16, 1>}, {transform_indices = @transform_2, window_bounds = array<i64: 1, 4, 16, 1>}, {pipeline_mode = #tpu.pipeline_mode<synchronous>, transform_indices = @transform_3, window_bounds = array<i64: 2, 256>}, {pipeline_mode = #tpu.pipeline_mode<synchronous>, transform_indices = @transform_4, window_bounds = array<i64: 1, 256>}, {pipeline_mode = #tpu.pipeline_mode<synchronous>, transform_indices = @transform_5, window_bounds = array<i64: 5, 256, 256>}, {pipeline_mode = #tpu.pipeline_mode<synchronous>, transform_indices = @transform_6, window_bounds = array<i64: 5, 1, 256>}, {pipeline_mode = #tpu.pipeline_mode<synchronous>, transform_indices = @transform_7, window_bounds = array<i64: 256, 128>}, {pipeline_mode = #tpu.pipeline_mode<synchronous>, transform_indices = @transform_8, window_bounds = array<i64: 1, 128>}, {pipeline_mode = #tpu.pipeline_mode<synchronous>, transform_indices = @transform_9, window_bounds = array<i64: 1, 128>}, {pipeline_mode = #tpu.pipeline_mode<synchronous>, transform_indices = @transform_10, window_bounds = array<i64: 128, 128>}, {pipeline_mode = #tpu.pipeline_mode<synchronous>, transform_indices = @transform_11, window_bounds = array<i64: 1, 128>}, {pipeline_mode = #tpu.pipeline_mode<synchronous>, transform_indices = @transform_12, window_bounds = array<i64: 128, 2>}, {pipeline_mode = #tpu.pipeline_mode<synchronous>, transform_indices = @transform_13, window_bounds = array<i64: 1, 2>}, {transform_indices = @transform_14, window_bounds = array<i64: 1, 4, 16>}]} {
    %c0 = arith.constant 0 : index
    %c0_0 = arith.constant 0 : index
    %c0_1 = arith.constant 0 : index
    %c0_2 = arith.constant 0 : index
    %0 = vector.load %arg1[%c0, %c0_0, %c0_1, %c0_2] : memref<1x4x8x2xf32, #tpu.memory_space<vmem>>, vector<1x4x8x2xf32>
    %1 = vector.shape_cast %0 : vector<1x4x8x2xf32> to vector<4x8x2xf32>
    %c0_3 = arith.constant 0 : index
    %c0_4 = arith.constant 0 : index
    %c0_5 = arith.constant 0 : index
    %c0_6 = arith.constant 0 : index
    %2 = vector.load %arg2[%c0_3, %c0_4, %c0_5, %c0_6] : memref<1x4x16x1xf32, #tpu.memory_space<vmem>>, vector<1x4x16x1xf32>
    %3 = vector.shape_cast %2 : vector<1x4x16x1xf32> to vector<4x16x1xf32>
    %c0_7 = arith.constant 0 : index
    %c0_8 = arith.constant 0 : index
    %c0_9 = arith.constant 0 : index
    %c0_10 = arith.constant 0 : index
    %4 = vector.load %arg3[%c0_7, %c0_8, %c0_9, %c0_10] : memref<1x4x16x1xf32, #tpu.memory_space<vmem>>, vector<1x4x16x1xf32>
    %5 = vector.shape_cast %4 : vector<1x4x16x1xf32> to vector<4x16x1xf32>
    %6 = vector.shape_cast %1 : vector<4x8x2xf32> to vector<32x2xf32>
    %c0_11 = arith.constant 0 : index
    %c0_12 = arith.constant 0 : index
    %7 = vector.load %arg4[%c0_11, %c0_12] : memref<2x256xf32, #tpu.memory_space<vmem>>, vector<2x256xf32>
    %8 = vector.extract_strided_slice %6 {offsets = [0, 0], sizes = [32, 1], strides = [1, 1]} : vector<32x2xf32> to vector<32x1xf32>
    %9 = vector.extract_strided_slice %7 {offsets = [0, 0], sizes = [1, 256], strides = [1, 1]} : vector<2x256xf32> to vector<1x256xf32>
    %10 = vector.broadcast %8 : vector<32x1xf32> to vector<32x256xf32>
    %11 = vector.broadcast %9 : vector<1x256xf32> to vector<32x256xf32>
    %12 = arith.mulf %10, %11 : vector<32x256xf32>
    %13 = vector.extract_strided_slice %6 {offsets = [0, 1], sizes = [32, 1], strides = [1, 1]} : vector<32x2xf32> to vector<32x1xf32>
    %14 = vector.extract_strided_slice %7 {offsets = [1, 0], sizes = [1, 256], strides = [1, 1]} : vector<2x256xf32> to vector<1x256xf32>
    %15 = vector.broadcast %13 : vector<32x1xf32> to vector<32x256xf32>
    %16 = vector.broadcast %14 : vector<1x256xf32> to vector<32x256xf32>
    %17 = arith.mulf %15, %16 : vector<32x256xf32>
    %18 = arith.addf %12, %17 : vector<32x256xf32>
    %c0_13 = arith.constant 0 : index
    %c0_14 = arith.constant 0 : index
    %19 = vector.load %arg5[%c0_13, %c0_14] : memref<1x256xf32, #tpu.memory_space<vmem>>, vector<1x256xf32>
    %20 = vector.broadcast %19 : vector<1x256xf32> to vector<32x256xf32>
    %21 = arith.addf %18, %20 : vector<32x256xf32>
    %cst = arith.constant 0.000000e+00 : f32
    %22 = vector.broadcast %cst : f32 to vector<32x256xf32>
    %23 = arith.maximumf %21, %22 : vector<32x256xf32>
    %c0_15 = arith.constant 0 : index
    %c0_16 = arith.constant 0 : index
    %c0_17 = arith.constant 0 : index
    %24 = vector.load %arg6[%c0_15, %c0_16, %c0_17] : memref<5x256x256xf32, #tpu.memory_space<vmem>>, vector<1x256x256xf32>
    %25 = vector.shape_cast %24 : vector<1x256x256xf32> to vector<256x256xf32>
    %cst_18 = arith.constant dense<0.000000e+00> : vector<32x256xf32>
    %26 = tpu.matmul %23, %25, %cst_18 {dimension_numbers = #tpu.dot_dimension_numbers<[1], [0], [0], [1], [0, 0, 1, 1], [], []>} : vector<32x256xf32>, vector<256x256xf32>, vector<32x256xf32> -> vector<32x256xf32>
    %c0_19 = arith.constant 0 : index
    %c0_20 = arith.constant 0 : index
    %c0_21 = arith.constant 0 : index
    %27 = vector.load %arg7[%c0_19, %c0_20, %c0_21] : memref<5x1x256xf32, #tpu.memory_space<vmem>>, vector<1x1x256xf32>
    %28 = vector.shape_cast %27 : vector<1x1x256xf32> to vector<1x256xf32>
    %29 = vector.broadcast %28 : vector<1x256xf32> to vector<32x256xf32>
    %30 = arith.addf %26, %29 : vector<32x256xf32>
    %cst_22 = arith.constant 0.000000e+00 : f32
    %31 = vector.broadcast %cst_22 : f32 to vector<32x256xf32>
    %32 = arith.maximumf %30, %31 : vector<32x256xf32>
    %c1 = arith.constant 1 : index
    %c0_23 = arith.constant 0 : index
    %c0_24 = arith.constant 0 : index
    %33 = vector.load %arg6[%c1, %c0_23, %c0_24] : memref<5x256x256xf32, #tpu.memory_space<vmem>>, vector<1x256x256xf32>
    %34 = vector.shape_cast %33 : vector<1x256x256xf32> to vector<256x256xf32>
    %cst_25 = arith.constant dense<0.000000e+00> : vector<32x256xf32>
    %35 = tpu.matmul %32, %34, %cst_25 {dimension_numbers = #tpu.dot_dimension_numbers<[1], [0], [0], [1], [0, 0, 1, 1], [], []>} : vector<32x256xf32>, vector<256x256xf32>, vector<32x256xf32> -> vector<32x256xf32>
    %c1_26 = arith.constant 1 : index
    %c0_27 = arith.constant 0 : index
    %c0_28 = arith.constant 0 : index
    %36 = vector.load %arg7[%c1_26, %c0_27, %c0_28] : memref<5x1x256xf32, #tpu.memory_space<vmem>>, vector<1x1x256xf32>
    %37 = vector.shape_cast %36 : vector<1x1x256xf32> to vector<1x256xf32>
    %38 = vector.broadcast %37 : vector<1x256xf32> to vector<32x256xf32>
    %39 = arith.addf %35, %38 : vector<32x256xf32>
    %cst_29 = arith.constant 0.000000e+00 : f32
    %40 = vector.broadcast %cst_29 : f32 to vector<32x256xf32>
    %41 = arith.maximumf %39, %40 : vector<32x256xf32>
    %c2 = arith.constant 2 : index
    %c0_30 = arith.constant 0 : index
    %c0_31 = arith.constant 0 : index
    %42 = vector.load %arg6[%c2, %c0_30, %c0_31] : memref<5x256x256xf32, #tpu.memory_space<vmem>>, vector<1x256x256xf32>
    %43 = vector.shape_cast %42 : vector<1x256x256xf32> to vector<256x256xf32>
    %cst_32 = arith.constant dense<0.000000e+00> : vector<32x256xf32>
    %44 = tpu.matmul %41, %43, %cst_32 {dimension_numbers = #tpu.dot_dimension_numbers<[1], [0], [0], [1], [0, 0, 1, 1], [], []>} : vector<32x256xf32>, vector<256x256xf32>, vector<32x256xf32> -> vector<32x256xf32>
    %c2_33 = arith.constant 2 : index
    %c0_34 = arith.constant 0 : index
    %c0_35 = arith.constant 0 : index
    %45 = vector.load %arg7[%c2_33, %c0_34, %c0_35] : memref<5x1x256xf32, #tpu.memory_space<vmem>>, vector<1x1x256xf32>
    %46 = vector.shape_cast %45 : vector<1x1x256xf32> to vector<1x256xf32>
    %47 = vector.broadcast %46 : vector<1x256xf32> to vector<32x256xf32>
    %48 = arith.addf %44, %47 : vector<32x256xf32>
    %49 = vector.shape_cast %48 : vector<32x256xf32> to vector<4x8x256xf32>
    %cst_36 = arith.constant dense<0.000000e+00> : vector<4x256xf32>
    %50 = vector.multi_reduction <add>, %49, %cst_36 [1] : vector<4x8x256xf32> to vector<4x256xf32>
    %cst_37 = arith.constant 8.000000e+00 : f32
    %51 = vector.broadcast %cst_37 : f32 to vector<4x256xf32>
    %52 = arith.divf %50, %51 : vector<4x256xf32>
    %c3 = arith.constant 3 : index
    %c0_38 = arith.constant 0 : index
    %c0_39 = arith.constant 0 : index
    %53 = vector.load %arg6[%c3, %c0_38, %c0_39] : memref<5x256x256xf32, #tpu.memory_space<vmem>>, vector<1x256x256xf32>
    %54 = vector.shape_cast %53 : vector<1x256x256xf32> to vector<256x256xf32>
    %cst_40 = arith.constant dense<0.000000e+00> : vector<4x256xf32>
    %55 = tpu.matmul %52, %54, %cst_40 {dimension_numbers = #tpu.dot_dimension_numbers<[1], [0], [0], [1], [0, 0, 1, 1], [], []>} : vector<4x256xf32>, vector<256x256xf32>, vector<4x256xf32> -> vector<4x256xf32>
    %c3_41 = arith.constant 3 : index
    %c0_42 = arith.constant 0 : index
    %c0_43 = arith.constant 0 : index
    %56 = vector.load %arg7[%c3_41, %c0_42, %c0_43] : memref<5x1x256xf32, #tpu.memory_space<vmem>>, vector<1x1x256xf32>
    %57 = vector.shape_cast %56 : vector<1x1x256xf32> to vector<1x256xf32>
    %58 = vector.broadcast %57 : vector<1x256xf32> to vector<4x256xf32>
    %59 = arith.addf %55, %58 : vector<4x256xf32>
    %cst_44 = arith.constant 0.000000e+00 : f32
    %60 = vector.broadcast %cst_44 : f32 to vector<4x256xf32>
    %61 = arith.maximumf %59, %60 : vector<4x256xf32>
    %c4 = arith.constant 4 : index
    %c0_45 = arith.constant 0 : index
    %c0_46 = arith.constant 0 : index
    %62 = vector.load %arg6[%c4, %c0_45, %c0_46] : memref<5x256x256xf32, #tpu.memory_space<vmem>>, vector<1x256x256xf32>
    %63 = vector.shape_cast %62 : vector<1x256x256xf32> to vector<256x256xf32>
    %cst_47 = arith.constant dense<0.000000e+00> : vector<4x256xf32>
    %64 = tpu.matmul %61, %63, %cst_47 {dimension_numbers = #tpu.dot_dimension_numbers<[1], [0], [0], [1], [0, 0, 1, 1], [], []>} : vector<4x256xf32>, vector<256x256xf32>, vector<4x256xf32> -> vector<4x256xf32>
    %c4_48 = arith.constant 4 : index
    %c0_49 = arith.constant 0 : index
    %c0_50 = arith.constant 0 : index
    %65 = vector.load %arg7[%c4_48, %c0_49, %c0_50] : memref<5x1x256xf32, #tpu.memory_space<vmem>>, vector<1x1x256xf32>
    %66 = vector.shape_cast %65 : vector<1x1x256xf32> to vector<1x256xf32>
    %67 = vector.broadcast %66 : vector<1x256xf32> to vector<4x256xf32>
    %68 = arith.addf %64, %67 : vector<4x256xf32>
    %c0_51 = arith.constant 0 : index
    %c0_52 = arith.constant 0 : index
    %69 = vector.load %arg8[%c0_51, %c0_52] : memref<256x128xf32, #tpu.memory_space<vmem>>, vector<256x128xf32>
    %cst_53 = arith.constant dense<0.000000e+00> : vector<4x128xf32>
    %70 = tpu.matmul %68, %69, %cst_53 {dimension_numbers = #tpu.dot_dimension_numbers<[1], [0], [0], [1], [0, 0, 1, 1], [], []>} : vector<4x256xf32>, vector<256x128xf32>, vector<4x128xf32> -> vector<4x128xf32>
    %c0_54 = arith.constant 0 : index
    %c0_55 = arith.constant 0 : index
    %71 = vector.load %arg10[%c0_54, %c0_55] : memref<1x128xf32, #tpu.memory_space<vmem>>, vector<1x128xf32>
    %72 = vector.broadcast %71 : vector<1x128xf32> to vector<4x128xf32>
    %73 = arith.addf %70, %72 : vector<4x128xf32>
    %c0_56 = arith.constant 0 : index
    %c0_57 = arith.constant 0 : index
    %74 = vector.load %arg9[%c0_56, %c0_57] : memref<1x128xf32, #tpu.memory_space<vmem>>, vector<1x128xf32>
    %75 = vector.shape_cast %74 : vector<1x128xf32> to vector<1x1x128xf32>
    %76 = vector.broadcast %3 : vector<4x16x1xf32> to vector<4x16x128xf32>
    %77 = vector.broadcast %75 : vector<1x1x128xf32> to vector<4x16x128xf32>
    %78 = arith.mulf %76, %77 : vector<4x16x128xf32>
    %79 = vector.shape_cast %73 : vector<4x128xf32> to vector<4x1x128xf32>
    %80 = vector.broadcast %79 : vector<4x1x128xf32> to vector<4x16x128xf32>
    %81 = arith.addf %78, %80 : vector<4x16x128xf32>
    %cst_58 = arith.constant 0.000000e+00 : f32
    %82 = vector.broadcast %cst_58 : f32 to vector<4x16x128xf32>
    %83 = arith.maximumf %81, %82 : vector<4x16x128xf32>
    %84 = vector.shape_cast %83 : vector<4x16x128xf32> to vector<64x128xf32>
    %c0_59 = arith.constant 0 : index
    %c0_60 = arith.constant 0 : index
    %85 = vector.load %arg11[%c0_59, %c0_60] : memref<128x128xf32, #tpu.memory_space<vmem>>, vector<128x128xf32>
    %cst_61 = arith.constant dense<0.000000e+00> : vector<64x128xf32>
    %86 = tpu.matmul %84, %85, %cst_61 {dimension_numbers = #tpu.dot_dimension_numbers<[1], [0], [0], [1], [0, 0, 1, 1], [], []>} : vector<64x128xf32>, vector<128x128xf32>, vector<64x128xf32> -> vector<64x128xf32>
    %c0_62 = arith.constant 0 : index
    %c0_63 = arith.constant 0 : index
    %87 = vector.load %arg12[%c0_62, %c0_63] : memref<1x128xf32, #tpu.memory_space<vmem>>, vector<1x128xf32>
    %88 = vector.broadcast %87 : vector<1x128xf32> to vector<64x128xf32>
    %89 = arith.addf %86, %88 : vector<64x128xf32>
    %cst_64 = arith.constant 0.000000e+00 : f32
    %90 = vector.broadcast %cst_64 : f32 to vector<64x128xf32>
    %91 = arith.maximumf %89, %90 : vector<64x128xf32>
    %c0_65 = arith.constant 0 : index
    %c0_66 = arith.constant 0 : index
    %92 = vector.load %arg13[%c0_65, %c0_66] : memref<128x2xf32, #tpu.memory_space<vmem>>, vector<128x2xf32>
    %cst_67 = arith.constant dense<0.000000e+00> : vector<64x2xf32>
    %93 = tpu.matmul %91, %92, %cst_67 {dimension_numbers = #tpu.dot_dimension_numbers<[1], [0], [0], [1], [0, 0, 1, 1], [], []>} : vector<64x128xf32>, vector<128x2xf32>, vector<64x2xf32> -> vector<64x2xf32>
    %c0_68 = arith.constant 0 : index
    %c0_69 = arith.constant 0 : index
    %94 = vector.load %arg14[%c0_68, %c0_69] : memref<1x2xf32, #tpu.memory_space<vmem>>, vector<1x2xf32>
    %95 = vector.broadcast %94 : vector<1x2xf32> to vector<64x2xf32>
    %96 = arith.addf %93, %95 : vector<64x2xf32>
    %97 = vector.shape_cast %96 : vector<64x2xf32> to vector<4x16x2xf32>
    %98 = vector.extract_strided_slice %97 {offsets = [0, 0, 0], sizes = [4, 16, 1], strides = [1, 1, 1]} : vector<4x16x2xf32> to vector<4x16x1xf32>
    %99 = vector.extract_strided_slice %97 {offsets = [0, 0, 1], sizes = [4, 16, 1], strides = [1, 1, 1]} : vector<4x16x2xf32> to vector<4x16x1xf32>
    %cst_70 = arith.constant 0.000000e+00 : f32
    %100 = vector.broadcast %cst_70 : f32 to vector<4x16x1xf32>
    %101 = arith.maximumf %99, %100 : vector<4x16x1xf32>
    %102 = math.absf %99 : vector<4x16x1xf32>
    %cst_71 = arith.constant 0.000000e+00 : f32
    %103 = vector.broadcast %cst_71 : f32 to vector<4x16x1xf32>
    %104 = arith.subf %103, %102 : vector<4x16x1xf32>
    %105 = math.exp %104 : vector<4x16x1xf32>
    %106 = math.log1p %105 : vector<4x16x1xf32>
    %107 = arith.addf %101, %106 : vector<4x16x1xf32>
    %cst_72 = arith.constant 0.899999976 : f32
    %108 = vector.broadcast %cst_72 : f32 to vector<4x16x1xf32>
    %109 = arith.mulf %108, %107 : vector<4x16x1xf32>
    %cst_73 = arith.constant 1.000000e-01 : f32
    %110 = vector.broadcast %cst_73 : f32 to vector<4x16x1xf32>
    %111 = arith.addf %110, %109 : vector<4x16x1xf32>
    %112 = arith.subf %5, %98 : vector<4x16x1xf32>
    %113 = arith.divf %112, %111 : vector<4x16x1xf32>
    %cst_74 = arith.constant -5.000000e-01 : f32
    %114 = vector.broadcast %cst_74 : f32 to vector<4x16x1xf32>
    %115 = arith.mulf %114, %113 : vector<4x16x1xf32>
    %116 = arith.mulf %115, %113 : vector<4x16x1xf32>
    %117 = math.log %111 : vector<4x16x1xf32>
    %118 = arith.subf %116, %117 : vector<4x16x1xf32>
    %cst_75 = arith.constant 0.918938517 : f32
    %119 = vector.broadcast %cst_75 : f32 to vector<4x16x1xf32>
    %120 = arith.subf %118, %119 : vector<4x16x1xf32>
    %cst_76 = arith.constant dense<0.000000e+00> : vector<4x16xf32>
    %121 = vector.multi_reduction <add>, %120, %cst_76 [2] : vector<4x16x1xf32> to vector<4x16xf32>
    %c0_77 = arith.constant 0 : index
    %c0_78 = arith.constant 0 : index
    %c0_79 = arith.constant 0 : index
    %122 = vector.load %arg15[%c0_77, %c0_78, %c0_79] : memref<1x4x16xf32, #tpu.memory_space<vmem>>, vector<1x4x16xf32>
    %123 = vector.shape_cast %122 : vector<1x4x16xf32> to vector<4x16xf32>
    %124 = vector.shape_cast %121 : vector<4x16xf32> to vector<1x4x16xf32>
    tpu.vector_store %arg15[%c0_77, %c0_78, %c0_79], %124 {strides = array<i32>} : memref<1x4x16xf32, #tpu.memory_space<vmem>>, vector<1x4x16xf32>,
    return
  }
  func.func @transform_0(%arg0: i32) -> (i32, i32, i32, i32) {
    %c0_i32 = arith.constant 0 : i32
    %c0_i32_0 = arith.constant 0 : i32
    %c0_i32_1 = arith.constant 0 : i32
    %c0_i32_2 = arith.constant 0 : i32
    return %arg0, %c0_i32, %c0_i32_0, %c0_i32_1 : i32, i32, i32, i32
  }
  func.func @transform_1(%arg0: i32) -> (i32, i32, i32, i32) {
    %c0_i32 = arith.constant 0 : i32
    %c0_i32_0 = arith.constant 0 : i32
    %c0_i32_1 = arith.constant 0 : i32
    %c0_i32_2 = arith.constant 0 : i32
    return %arg0, %c0_i32, %c0_i32_0, %c0_i32_1 : i32, i32, i32, i32
  }
  func.func @transform_2(%arg0: i32) -> (i32, i32, i32, i32) {
    %c0_i32 = arith.constant 0 : i32
    %c0_i32_0 = arith.constant 0 : i32
    %c0_i32_1 = arith.constant 0 : i32
    %c0_i32_2 = arith.constant 0 : i32
    return %arg0, %c0_i32, %c0_i32_0, %c0_i32_1 : i32, i32, i32, i32
  }
  func.func @transform_3(%arg0: i32) -> (i32, i32) {
    %c0_i32 = arith.constant 0 : i32
    %c0_i32_0 = arith.constant 0 : i32
    %c0_i32_1 = arith.constant 0 : i32
    return %c0_i32, %c0_i32_0 : i32, i32
  }
  func.func @transform_4(%arg0: i32) -> (i32, i32) {
    %c0_i32 = arith.constant 0 : i32
    %c0_i32_0 = arith.constant 0 : i32
    %c0_i32_1 = arith.constant 0 : i32
    return %c0_i32, %c0_i32_0 : i32, i32
  }
  func.func @transform_5(%arg0: i32) -> (i32, i32, i32) {
    %c0_i32 = arith.constant 0 : i32
    %c0_i32_0 = arith.constant 0 : i32
    %c0_i32_1 = arith.constant 0 : i32
    %c0_i32_2 = arith.constant 0 : i32
    return %c0_i32, %c0_i32_0, %c0_i32_1 : i32, i32, i32
  }
  func.func @transform_6(%arg0: i32) -> (i32, i32, i32) {
    %c0_i32 = arith.constant 0 : i32
    %c0_i32_0 = arith.constant 0 : i32
    %c0_i32_1 = arith.constant 0 : i32
    %c0_i32_2 = arith.constant 0 : i32
    return %c0_i32, %c0_i32_0, %c0_i32_1 : i32, i32, i32
  }
  func.func @transform_7(%arg0: i32) -> (i32, i32) {
    %c0_i32 = arith.constant 0 : i32
    %c0_i32_0 = arith.constant 0 : i32
    %c0_i32_1 = arith.constant 0 : i32
    return %c0_i32, %c0_i32_0 : i32, i32
  }
  func.func @transform_8(%arg0: i32) -> (i32, i32) {
    %c0_i32 = arith.constant 0 : i32
    %c0_i32_0 = arith.constant 0 : i32
    %c0_i32_1 = arith.constant 0 : i32
    return %c0_i32, %c0_i32_0 : i32, i32
  }
  func.func @transform_9(%arg0: i32) -> (i32, i32) {
    %c0_i32 = arith.constant 0 : i32
    %c0_i32_0 = arith.constant 0 : i32
    %c0_i32_1 = arith.constant 0 : i32
    return %c0_i32, %c0_i32_0 : i32, i32
  }
  func.func @transform_10(%arg0: i32) -> (i32, i32) {
    %c0_i32 = arith.constant 0 : i32
    %c0_i32_0 = arith.constant 0 : i32
    %c0_i32_1 = arith.constant 0 : i32
    return %c0_i32, %c0_i32_0 : i32, i32
  }
  func.func @transform_11(%arg0: i32) -> (i32, i32) {
    %c0_i32 = arith.constant 0 : i32
    %c0_i32_0 = arith.constant 0 : i32
    %c0_i32_1 = arith.constant 0 : i32
    return %c0_i32, %c0_i32_0 : i32, i32
  }
  func.func @transform_12(%arg0: i32) -> (i32, i32) {
    %c0_i32 = arith.constant 0 : i32
    %c0_i32_0 = arith.constant 0 : i32
    %c0_i32_1 = arith.constant 0 : i32
    return %c0_i32, %c0_i32_0 : i32, i32
  }
  func.func @transform_13(%arg0: i32) -> (i32, i32) {
    %c0_i32 = arith.constant 0 : i32
    %c0_i32_0 = arith.constant 0 : i32
    %c0_i32_1 = arith.constant 0 : i32
    return %c0_i32, %c0_i32_0 : i32, i32
  }
  func.func @transform_14(%arg0: i32) -> (i32, i32, i32) {
    %c0_i32 = arith.constant 0 : i32
    %c0_i32_0 = arith.constant 0 : i32
    %c0_i32_1 = arith.constant 0 : i32
    return %arg0, %c0_i32, %c0_i32_0 : i32, i32, i32
  }
}

</mosaic_0001>

<llo_original>
// kernel: tpu_custom_call.1
$region0: #{tpu_custom_call.1}
  #allocation0 [shape = 'u32[]', space=smem, size = 0x4, offset = 0x4, fixed_abs, tag = 'smem constant byte address 0x4 - core index']
  #allocation1 [shape = 'u32[72,128]{1,0:T(1,128)}', space=vmem, size = 0x9000, scoped, tag = 'internal scratch']
  %s0 = inlined_call_operand.vmem [shape: f32[2,4,8,2], index: 0, kind: input, shape index: {}]
  %s1 = inlined_call_operand.vmem [shape: f32[2,4,16,1], index: 1, kind: input, shape index: {}]
  %s2 = inlined_call_operand.vmem [shape: f32[2,4,16,1], index: 2, kind: input, shape index: {}]
  %s3 = inlined_call_operand.hbm [shape: f32[2,256], index: 3, kind: input, shape index: {}]
  %s4 = inlined_call_operand.hbm [shape: f32[1,256], index: 4, kind: input, shape index: {}]
  %s5 = inlined_call_operand.hbm [shape: f32[5,256,256], index: 5, kind: input, shape index: {}]
  %s6 = inlined_call_operand.hbm [shape: f32[5,1,256], index: 6, kind: input, shape index: {}]
  %s7 = inlined_call_operand.hbm [shape: f32[256,128], index: 7, kind: input, shape index: {}]
  %s8 = inlined_call_operand.hbm [shape: f32[1,128], index: 8, kind: input, shape index: {}]
  %s9 = inlined_call_operand.hbm [shape: f32[1,128], index: 9, kind: input, shape index: {}]
  %s10 = inlined_call_operand.hbm [shape: f32[128,128], index: 10, kind: input, shape index: {}]
  %s11 = inlined_call_operand.hbm [shape: f32[1,128], index: 11, kind: input, shape index: {}]
  %s12 = inlined_call_operand.vmem [shape: f32[128,2], index: 12, kind: input, shape index: {}]
  %s13 = inlined_call_operand.hbm [shape: f32[1,2], index: 13, kind: input, shape index: {}]
  %s14 = inlined_call_operand.hbm [shape: f32[2,4,16], index: 14, kind: output, shape index: {}]
  %s15 = sld [smem:[#allocation0]]
  $region129: #{tpu_custom_call.1} parent=0
    _
  %s17 = ssub.s32 1, %s15
  %s18 = scalar_select 0, %s17, %s15
  $region1: #{tpu_custom_call.1} parent=0
    #allocation2 [shape = 'u8[2048]{0}', space=vmem, size = 0x800, scoped, tag = 'input window, operand 3, single buffered']
    #allocation3 [shape = 's32[2]{0}', space=sflag, size = 0x8, scoped, tag = 'scoped memory for tpu_custom_call.1']
    #allocation4 [shape = 's32[2]{0}', space=sflag, size = 0x8, scoped, tag = 'scoped memory for tpu_custom_call.1']
    #allocation5 [shape = 'u8[1024]{0}', space=vmem, size = 0x400, scoped, tag = 'input window, operand 4, single buffered']
    #allocation6 [shape = 's32[1]{0}', space=sflag, size = 0x4, scoped, tag = 'scoped memory for tpu_custom_call.1']
    #allocation7 [shape = 'u8[1310720]{0}', space=vmem, size = 0x140000, scoped, tag = 'input window, operand 5, single buffered']
    #allocation8 [shape = 'u8[5120]{0}', space=vmem, size = 0x1400, scoped, tag = 'input window, operand 6, single buffered']
    #allocation9 [shape = 's32[1]{0}', space=sflag, size = 0x4, scoped, tag = 'scoped memory for tpu_custom_call.1']
    #allocation10 [shape = 'u8[131072]{0}', space=vmem, size = 0x20000, scoped, tag = 'input window, operand 7, single buffered']
    #allocation11 [shape = 'u8[512]{0}', space=vmem, size = 0x400, scoped, tag = 'input window, operand 8, single buffered']
    #allocation12 [shape = 's32[1]{0}', space=sflag, size = 0x4, scoped, tag = 'scoped memory for tpu_custom_call.1']
    #allocation13 [shape = 'u8[512]{0}', space=vmem, size = 0x400, scoped, tag = 'input window, operand 9, single buffered']
    #allocation14 [shape = 'u8[65536]{0}', space=vmem, size = 0x10000, scoped, tag = 'input window, operand 10, single buffered']
    #allocation15 [shape = 's32[1]{0}', space=sflag, size = 0x4, scoped, tag = 'scoped memory for tpu_custom_call.1']
    #allocation16 [shape = 'u8[512]{0}', space=vmem, size = 0x400, scoped, tag = 'input window, operand 11, single buffered']
    #allocation17 [shape = 'u8[512]{0}', space=vmem, size = 0x400, scoped, tag = 'input window, operand 13, single buffered']
    #allocation18 [shape = 's32[1]{0}', space=sflag, size = 0x4, scoped, tag = 'scoped memory for tpu_custom_call.1']
    #allocation19 [shape = 'u8[4096]{0}', space=vmem, size = 0x1000, scoped, tag = 'output window, operand 0']
    %19 = vsyncpa [#allocation3], 0
    %20 = vsyncpa [#allocation6], 0
    %21 = vsyncpa [#allocation9], 0
    %22 = vsyncpa [#allocation12], 0
    %23 = vsyncpa [#allocation15], 0
    %24 = vsyncpa [#allocation18], 0
    %25 = vsyncpa [#allocation4], 0
    %s26 = scalar_lea.sflag [#allocation4], 1
    %27 = vsyncpa %s26, 0
    loop: start=0, step=1, limit=4
    $region2: #{tpu_custom_call.1} parent=1 // loop_pre_header
      _
    $region3: #{tpu_custom_call.1} parent=1 // loop_header
      %s29 = sphi 0, %s33
      %p30 = scmp.ge.s32.totalorder %s29, 4
      %s39 = sphi 0, %s41
      %s42 = sphi 0, %s39
      %s43 = sphi 0, %s42
      %s59 = sphi 0, %s43
      %s65 = sphi 0, %s67
      %s68 = sphi 0, %s65
      %s69 = sphi 0, %s68
      %s85 = sphi 0, %s69
      %s91 = sphi 0, %s93
      %s94 = sphi 0, %s91
      %s95 = sphi 0, %s94
      %s111 = sphi 0, %s95
      %s115 = sphi 0, %s115
      %s117 = sphi 0, %s115
      %s118 = sphi 0, %s117
      %s132 = sphi 0, %s118
      %s136 = sphi 0, %s136
      %s138 = sphi 0, %s136
      %s139 = sphi 0, %s138
      %s153 = sphi 0, %s139
      %s157 = sphi 0, %s157
      %s159 = sphi 0, %s157
      %s160 = sphi 0, %s159
      %s174 = sphi 0, %s160
      %s178 = sphi 0, %s178
      %s180 = sphi 0, %s178
      %s181 = sphi 0, %s180
      %s195 = sphi 0, %s181
      %s199 = sphi 0, %s199
      %s201 = sphi 0, %s199
      %s202 = sphi 0, %s201
      %s216 = sphi 0, %s202
      %s220 = sphi 0, %s220
      %s222 = sphi 0, %s220
      %s223 = sphi 0, %s222
      %s237 = sphi 0, %s223
      %s241 = sphi 0, %s241
      %s243 = sphi 0, %s241
      %s244 = sphi 0, %s243
      %s258 = sphi 0, %s244
      %s262 = sphi 0, %s262
      %s264 = sphi 0, %s262
      %s265 = sphi 0, %s264
      %s279 = sphi 0, %s265
      %s283 = sphi 0, %s283
      %s285 = sphi 0, %s283
      %s286 = sphi 0, %s285
      %s300 = sphi 0, %s286
      %s304 = sphi 0, %s304
      %s306 = sphi 0, %s304
      %s307 = sphi 0, %s306
      %s321 = sphi 0, %s307
      %s325 = sphi 0, %s325
      %s327 = sphi 0, %s325
      %s328 = sphi 0, %s327
      %s342 = sphi 0, %s328
      %s348 = sphi 0, %s350
      %s351 = sphi 0, %s348
      %s352 = sphi 0, %s351
      %s368 = sphi 0, %s352
    $region4: #{tpu_custom_call.1} parent=1 // loop_header_branch
      %32 = sbr.rel (%p30) target = $region8
    $region5: #{tpu_custom_call.1} parent=1 // loop_body
      %s34 = ssub.s32 %s29, 1
      %s35 = ssub.s32 %s29, 2
      %s36 = sadd.s32 %s29, 1
      %s37 = ssub.s32 %s29, %s36
      %p38 = scmp.eq.s32.totalorder %s37, 0
      %s40 = sadd.s32 %s39, 1
      %s41 = scalar_select %p38, %s39, %s40
      %p44 = pneg %p38
      %p45 = scmp.eq.s32.totalorder %s29, 1
      %p46 = por %p44, %p45
      %p47 = scmp.ne.s32.totalorder %s39, %s42
      %p48 = scmp.eq.s32.totalorder %s29, 0
      %p49 = por %p47, %p48
      %p50 = scmp.ne.s32.totalorder %s39, %s42
      %p51 = scmp.eq.s32.totalorder %s34, 1
      %p52 = por %p50, %p51
      %p53 = scmp.ne.s32.totalorder %s42, %s43
      %p54 = scmp.eq.s32.totalorder %s34, 0
      %p55 = por %p53, %p54
      %p56 = scmp.ne.s32.totalorder %s42, %s43
      %p57 = scmp.eq.s32.totalorder %s35, 1
      %p58 = por %p56, %p57
      %p60 = scmp.ne.s32.totalorder %s43, %s59
      %p61 = scmp.eq.s32.totalorder %s35, 0
      %p62 = por %p60, %p61
      %s63 = ssub.s32 %s29, %s36
      %p64 = scmp.eq.s32.totalorder %s63, 0
      %s66 = sadd.s32 %s65, 1
      %s67 = scalar_select %p64, %s65, %s66
      %p70 = pneg %p64
      %p71 = scmp.eq.s32.totalorder %s29, 1
      %p72 = por %p70, %p71
      %p73 = scmp.ne.s32.totalorder %s65, %s68
      %p74 = scmp.eq.s32.totalorder %s29, 0
      %p75 = por %p73, %p74
      %p76 = scmp.ne.s32.totalorder %s65, %s68
      %p77 = scmp.eq.s32.totalorder %s34, 1
      %p78 = por %p76, %p77
      %p79 = scmp.ne.s32.totalorder %s68, %s69
      %p80 = scmp.eq.s32.totalorder %s34, 0
      %p81 = por %p79, %p80
      %p82 = scmp.ne.s32.totalorder %s68, %s69
      %p83 = scmp.eq.s32.totalorder %s35, 1
      %p84 = por %p82, %p83
      %p86 = scmp.ne.s32.totalorder %s69, %s85
      %p87 = scmp.eq.s32.totalorder %s35, 0
      %p88 = por %p86, %p87
      %s89 = ssub.s32 %s29, %s36
      %p90 = scmp.eq.s32.totalorder %s89, 0
      %s92 = sadd.s32 %s91, 1
      %s93 = scalar_select %p90, %s91, %s92
      %p96 = pneg %p90
      %p97 = scmp.eq.s32.totalorder %s29, 1
      %p98 = por %p96, %p97
      %p99 = scmp.ne.s32.totalorder %s91, %s94
      %p100 = scmp.eq.s32.totalorder %s29, 0
      %p101 = por %p99, %p100
      %p102 = scmp.ne.s32.totalorder %s91, %s94
      %p103 = scmp.eq.s32.totalorder %s34, 1
      %p104 = por %p102, %p103
      %p105 = scmp.ne.s32.totalorder %s94, %s95
      %p106 = scmp.eq.s32.totalorder %s34, 0
      %p107 = por %p105, %p106
      %p108 = scmp.ne.s32.totalorder %s94, %s95
      %p109 = scmp.eq.s32.totalorder %s35, 1
      %p110 = por %p108, %p109
      %p112 = scmp.ne.s32.totalorder %s95, %s111
      %p113 = scmp.eq.s32.totalorder %s35, 0
      %p114 = por %p112, %p113
      %s116 = sadd.s32 %s115, 1
      %p119 = scmp.eq.s32.totalorder %s29, 1
      %p120 = scmp.ne.s32.totalorder %s115, %s117
      %p121 = scmp.eq.s32.totalorder %s29, 0
      %p122 = por %p120, %p121
      %p123 = scmp.ne.s32.totalorder %s115, %s117
      %p124 = scmp.eq.s32.totalorder %s34, 1
      %p125 = por %p123, %p124
      %p126 = scmp.ne.s32.totalorder %s117, %s118
      %p127 = scmp.eq.s32.totalorder %s34, 0
      %p128 = por %p126, %p127
      %p129 = scmp.ne.s32.totalorder %s117, %s118
      %p130 = scmp.eq.s32.totalorder %s35, 1
      %p131 = por %p129, %p130
      %p133 = scmp.ne.s32.totalorder %s118, %s132
      %p134 = scmp.eq.s32.totalorder %s35, 0
      %p135 = por %p133, %p134
      %s137 = sadd.s32 %s136, 1
      %p140 = scmp.eq.s32.totalorder %s29, 1
      %p141 = scmp.ne.s32.totalorder %s136, %s138
      %p142 = scmp.eq.s32.totalorder %s29, 0
      %p143 = por %p141, %p142
      %p144 = scmp.ne.s32.totalorder %s136, %s138
      %p145 = scmp.eq.s32.totalorder %s34, 1
      %p146 = por %p144, %p145
      %p147 = scmp.ne.s32.totalorder %s138, %s139
      %p148 = scmp.eq.s32.totalorder %s34, 0
      %p149 = por %p147, %p148
      %p150 = scmp.ne.s32.totalorder %s138, %s139
      %p151 = scmp.eq.s32.totalorder %s35, 1
      %p152 = por %p150, %p151
      %p154 = scmp.ne.s32.totalorder %s139, %s153
      %p155 = scmp.eq.s32.totalorder %s35, 0
      %p156 = por %p154, %p155
      %s158 = sadd.s32 %s157, 1
      %p161 = scmp.eq.s32.totalorder %s29, 1
      %p162 = scmp.ne.s32.totalorder %s157, %s159
      %p163 = scmp.eq.s32.totalorder %s29, 0
      %p164 = por %p162, %p163
      %p165 = scmp.ne.s32.totalorder %s157, %s159
      %p166 = scmp.eq.s32.totalorder %s34, 1
      %p167 = por %p165, %p166
      %p168 = scmp.ne.s32.totalorder %s159, %s160
      %p169 = scmp.eq.s32.totalorder %s34, 0
      %p170 = por %p168, %p169
      %p171 = scmp.ne.s32.totalorder %s159, %s160
      %p172 = scmp.eq.s32.totalorder %s35, 1
      %p173 = por %p171, %p172
      %p175 = scmp.ne.s32.totalorder %s160, %s174
      %p176 = scmp.eq.s32.totalorder %s35, 0
      %p177 = por %p175, %p176
      %s179 = sadd.s32 %s178, 1
      %p182 = scmp.eq.s32.totalorder %s29, 1
      %p183 = scmp.ne.s32.totalorder %s178, %s180
      %p184 = scmp.eq.s32.totalorder %s29, 0
      %p185 = por %p183, %p184
      %p186 = scmp.ne.s32.totalorder %s178, %s180
      %p187 = scmp.eq.s32.totalorder %s34, 1
      %p188 = por %p186, %p187
      %p189 = scmp.ne.s32.totalorder %s180, %s181
      %p190 = scmp.eq.s32.totalorder %s34, 0
      %p191 = por %p189, %p190
      %p192 = scmp.ne.s32.totalorder %s180, %s181
      %p193 = scmp.eq.s32.totalorder %s35, 1
      %p194 = por %p192, %p193
      %p196 = scmp.ne.s32.totalorder %s181, %s195
      %p197 = scmp.eq.s32.totalorder %s35, 0
      %p198 = por %p196, %p197
      %s200 = sadd.s32 %s199, 1
      %p203 = scmp.eq.s32.totalorder %s29, 1
      %p204 = scmp.ne.s32.totalorder %s199, %s201
      %p205 = scmp.eq.s32.totalorder %s29, 0
      %p206 = por %p204, %p205
      %p207 = scmp.ne.s32.totalorder %s199, %s201
      %p208 = scmp.eq.s32.totalorder %s34, 1
      %p209 = por %p207, %p208
      %p210 = scmp.ne.s32.totalorder %s201, %s202
      %p211 = scmp.eq.s32.totalorder %s34, 0
      %p212 = por %p210, %p211
      %p213 = scmp.ne.s32.totalorder %s201, %s202
      %p214 = scmp.eq.s32.totalorder %s35, 1
      %p215 = por %p213, %p214
      %p217 = scmp.ne.s32.totalorder %s202, %s216
      %p218 = scmp.eq.s32.totalorder %s35, 0
      %p219 = por %p217, %p218
      %s221 = sadd.s32 %s220, 1
      %p224 = scmp.eq.s32.totalorder %s29, 1
      %p225 = scmp.ne.s32.totalorder %s220, %s222
      %p226 = scmp.eq.s32.totalorder %s29, 0
      %p227 = por %p225, %p226
      %p228 = scmp.ne.s32.totalorder %s220, %s222
      %p229 = scmp.eq.s32.totalorder %s34, 1
      %p230 = por %p228, %p229
      %p231 = scmp.ne.s32.totalorder %s222, %s223
      %p232 = scmp.eq.s32.totalorder %s34, 0
      %p233 = por %p231, %p232
      %p234 = scmp.ne.s32.totalorder %s222, %s223
      %p235 = scmp.eq.s32.totalorder %s35, 1
      %p236 = por %p234, %p235
      %p238 = scmp.ne.s32.totalorder %s223, %s237
      %p239 = scmp.eq.s32.totalorder %s35, 0
      %p240 = por %p238, %p239
      %s242 = sadd.s32 %s241, 1
      %p245 = scmp.eq.s32.totalorder %s29, 1
      %p246 = scmp.ne.s32.totalorder %s241, %s243
      %p247 = scmp.eq.s32.totalorder %s29, 0
      %p248 = por %p246, %p247
      %p249 = scmp.ne.s32.totalorder %s241, %s243
      %p250 = scmp.eq.s32.totalorder %s34, 1
      %p251 = por %p249, %p250
      %p252 = scmp.ne.s32.totalorder %s243, %s244
      %p253 = scmp.eq.s32.totalorder %s34, 0
      %p254 = por %p252, %p253
      %p255 = scmp.ne.s32.totalorder %s243, %s244
      %p256 = scmp.eq.s32.totalorder %s35, 1
      %p257 = por %p255, %p256
      %p259 = scmp.ne.s32.totalorder %s244, %s258
      %p260 = scmp.eq.s32.totalorder %s35, 0
      %p261 = por %p259, %p260
      %s263 = sadd.s32 %s262, 1
      %p266 = scmp.eq.s32.totalorder %s29, 1
      %p267 = scmp.ne.s32.totalorder %s262, %s264
      %p268 = scmp.eq.s32.totalorder %s29, 0
      %p269 = por %p267, %p268
      %p270 = scmp.ne.s32.totalorder %s262, %s264
      %p271 = scmp.eq.s32.totalorder %s34, 1
      %p272 = por %p270, %p271
      %p273 = scmp.ne.s32.totalorder %s264, %s265
      %p274 = scmp.eq.s32.totalorder %s34, 0
      %p275 = por %p273, %p274
      %p276 = scmp.ne.s32.totalorder %s264, %s265
      %p277 = scmp.eq.s32.totalorder %s35, 1
      %p278 = por %p276, %p277
      %p280 = scmp.ne.s32.totalorder %s265, %s279
      %p281 = scmp.eq.s32.totalorder %s35, 0
      %p282 = por %p280, %p281
      %s284 = sadd.s32 %s283, 1
      %p287 = scmp.eq.s32.totalorder %s29, 1
      %p288 = scmp.ne.s32.totalorder %s283, %s285
      %p289 = scmp.eq.s32.totalorder %s29, 0
      %p290 = por %p288, %p289
      %p291 = scmp.ne.s32.totalorder %s283, %s285
      %p292 = scmp.eq.s32.totalorder %s34, 1
      %p293 = por %p291, %p292
      %p294 = scmp.ne.s32.totalorder %s285, %s286
      %p295 = scmp.eq.s32.totalorder %s34, 0
      %p296 = por %p294, %p295
      %p297 = scmp.ne.s32.totalorder %s285, %s286
      %p298 = scmp.eq.s32.totalorder %s35, 1
      %p299 = por %p297, %p298
      %p301 = scmp.ne.s32.totalorder %s286, %s300
      %p302 = scmp.eq.s32.totalorder %s35, 0
      %p303 = por %p301, %p302
      %s305 = sadd.s32 %s304, 1
      %p308 = scmp.eq.s32.totalorder %s29, 1
      %p309 = scmp.ne.s32.totalorder %s304, %s306
      %p310 = scmp.eq.s32.totalorder %s29, 0
      %p311 = por %p309, %p310
      %p312 = scmp.ne.s32.totalorder %s304, %s306
      %p313 = scmp.eq.s32.totalorder %s34, 1
      %p314 = por %p312, %p313
      %p315 = scmp.ne.s32.totalorder %s306, %s307
      %p316 = scmp.eq.s32.totalorder %s34, 0
      %p317 = por %p315, %p316
      %p318 = scmp.ne.s32.totalorder %s306, %s307
      %p319 = scmp.eq.s32.totalorder %s35, 1
      %p320 = por %p318, %p319
      %p322 = scmp.ne.s32.totalorder %s307, %s321
      %p323 = scmp.eq.s32.totalorder %s35, 0
      %p324 = por %p322, %p323
      %s326 = sadd.s32 %s325, 1
      %p329 = scmp.eq.s32.totalorder %s29, 1
      %p330 = scmp.ne.s32.totalorder %s325, %s327
      %p331 = scmp.eq.s32.totalorder %s29, 0
      %p332 = por %p330, %p331
      %p333 = scmp.ne.s32.totalorder %s325, %s327
      %p334 = scmp.eq.s32.totalorder %s34, 1
      %p335 = por %p333, %p334
      %p336 = scmp.ne.s32.totalorder %s327, %s328
      %p337 = scmp.eq.s32.totalorder %s34, 0
      %p338 = por %p336, %p337
      %p339 = scmp.ne.s32.totalorder %s327, %s328
      %p340 = scmp.eq.s32.totalorder %s35, 1
      %p341 = por %p339, %p340
      %p343 = scmp.ne.s32.totalorder %s328, %s342
      %p344 = scmp.eq.s32.totalorder %s35, 0
      %p345 = por %p343, %p344
      %s346 = ssub.s32 %s29, %s36
      %p347 = scmp.eq.s32.totalorder %s346, 0
      %s349 = sadd.s32 %s348, 1
      %s350 = scalar_select %p347, %s348, %s349
      %p353 = pneg %p347
      %p354 = scmp.eq.s32.totalorder %s29, 1
      %p355 = por %p353, %p354
      %p356 = scmp.ne.s32.totalorder %s348, %s351
      %p357 = scmp.eq.s32.totalorder %s29, 0
      %p358 = por %p356, %p357
      %p359 = scmp.ne.s32.totalorder %s348, %s351
      %p360 = scmp.eq.s32.totalorder %s34, 1
      %p361 = por %p359, %p360
      %p362 = scmp.ne.s32.totalorder %s351, %s352
      %p363 = scmp.eq.s32.totalorder %s34, 0
      %p364 = por %p362, %p363
      %p365 = scmp.ne.s32.totalorder %s351, %s352
      %p366 = scmp.eq.s32.totalorder %s35, 1
      %p367 = por %p365, %p366
      %p369 = scmp.ne.s32.totalorder %s352, %s368
      %p370 = scmp.eq.s32.totalorder %s35, 0
      %p371 = por %p369, %p370
      %p372 = scmp.le.s32.totalorder 1, %s29
      %p373 = scmp.lt.s32.totalorder %s29, 3
      %p374 = pnand %p372, %p373
      %p375 = pneg %p374
      // Predicated region
      $region9: #{tpu_custom_call.1} parent=5 // pred_check
        _
      $region10: #{tpu_custom_call.1} parent=5 // pred_check_branch
        %377 = sbr.rel (%p374) target = $region12
      $region11: #{tpu_custom_call.1} parent=5 // pred_region
        %s378 = ssub.s32 %s29, 1
        // Predicated region
        $region13: #{tpu_custom_call.1} parent=11 // pred_check
          %p379 = pneg %p128
        $region14: #{tpu_custom_call.1} parent=11 // pred_check_branch
          %381 = sbr.rel (%p379) target = $region16
        $region15: #{tpu_custom_call.1} parent=11 // pred_region
          %383 = vsyncadd [#allocation3], 0
          %s385 = sshll.u32 %s3, 4
          %s386 = int_to_ptr.hbm [resolvable:$true] %s385
          %s387 = sshll.u32 [#allocation2], 4
          %s388 = int_to_ptr.vmem [resolvable:$true] %s387
          %390 = dma.hbm_to_vmem [thread:$0]  %s386, 64, %s388, [#allocation3]
        $region16: #{tpu_custom_call.1} parent=11 // pred_fallthru
          _
        // Predicated region
        $region17: #{tpu_custom_call.1} parent=11 // pred_check
          %p391 = pneg %p149
        $region18: #{tpu_custom_call.1} parent=11 // pred_check_branch
          %393 = sbr.rel (%p391) target = $region20
        $region19: #{tpu_custom_call.1} parent=11 // pred_region
          %395 = vsyncadd [#allocation6], 0
          %s397 = sshll.u32 %s4, 4
          %s398 = int_to_ptr.hbm [resolvable:$true] %s397
          %s399 = sshll.u32 [#allocation5], 4
          %s400 = int_to_ptr.vmem [resolvable:$true] %s399
          %402 = dma.hbm_to_vmem [thread:$0]  %s398, 32, %s400, [#allocation6]
        $region20: #{tpu_custom_call.1} parent=11 // pred_fallthru
          _
        // Predicated region
        $region21: #{tpu_custom_call.1} parent=11 // pred_check
          %p403 = pneg %p170
        $region22: #{tpu_custom_call.1} parent=11 // pred_check_branch
          %405 = sbr.rel (%p403) target = $region24
        $region23: #{tpu_custom_call.1} parent=11 // pred_region
          %407 = vsyncadd [#allocation6], 0
          %s408 = sshll.u32 %s5, 4
          %s409 = int_to_ptr.hbm [resolvable:$true] %s408
          %s410 = sshll.u32 [#allocation7], 4
          %s411 = int_to_ptr.vmem [resolvable:$true] %s410
          %416 = dma.hbm_to_vmem [thread:$0]  %s409, 40960, %s411, [#allocation6], 256, 256, 16
        $region24: #{tpu_custom_call.1} parent=11 // pred_fallthru
          _
        // Predicated region
        $region25: #{tpu_custom_call.1} parent=11 // pred_check
          %p417 = pneg %p191
        $region26: #{tpu_custom_call.1} parent=11 // pred_check_branch
          %419 = sbr.rel (%p417) target = $region28
        $region27: #{tpu_custom_call.1} parent=11 // pred_region
          %421 = vsyncadd [#allocation9], 0
          %s422 = sshll.u32 %s6, 4
          %s423 = int_to_ptr.hbm [resolvable:$true] %s422
          %s424 = sshll.u32 [#allocation8], 4
          %s425 = int_to_ptr.vmem [resolvable:$true] %s424
          %430 = dma.hbm_to_vmem [thread:$0]  %s423, 160, %s425, [#allocation9], 32, 32, 2
        $region28: #{tpu_custom_call.1} parent=11 // pred_fallthru
          _
        // Predicated region
        $region29: #{tpu_custom_call.1} parent=11 // pred_check
          %p431 = pneg %p212
        $region30: #{tpu_custom_call.1} parent=11 // pred_check_branch
          %433 = sbr.rel (%p431) target = $region32
        $region31: #{tpu_custom_call.1} parent=11 // pred_region
          %435 = vsyncadd [#allocation9], 0
          %s436 = sshll.u32 %s7, 4
          %s437 = int_to_ptr.hbm [resolvable:$true] %s436
          %s438 = sshll.u32 [#allocation10], 4
          %s439 = int_to_ptr.vmem [resolvable:$true] %s438
          %444 = dma.hbm_to_vmem [thread:$0]  %s437, 4096, %s439, [#allocation9], 128, 128, 8
        $region32: #{tpu_custom_call.1} parent=11 // pred_fallthru
          _
        // Predicated region
        $region33: #{tpu_custom_call.1} parent=11 // pred_check
          %p445 = pneg %p233
        $region34: #{tpu_custom_call.1} parent=11 // pred_check_branch
          %447 = sbr.rel (%p445) target = $region36
        $region35: #{tpu_custom_call.1} parent=11 // pred_region
          %449 = vsyncadd [#allocation12], 0
          %s451 = sshll.u32 %s8, 4
          %s452 = int_to_ptr.hbm [resolvable:$true] %s451
          %s453 = sshll.u32 [#allocation11], 4
          %s454 = int_to_ptr.vmem [resolvable:$true] %s453
          %456 = dma.hbm_to_vmem [thread:$0]  %s452, 16, %s454, [#allocation12]
        $region36: #{tpu_custom_call.1} parent=11 // pred_fallthru
          _
        // Predicated region
        $region37: #{tpu_custom_call.1} parent=11 // pred_check
          %p457 = pneg %p254
        $region38: #{tpu_custom_call.1} parent=11 // pred_check_branch
          %459 = sbr.rel (%p457) target = $region40
        $region39: #{tpu_custom_call.1} parent=11 // pred_region
          %461 = vsyncadd [#allocation12], 0
          %s463 = sshll.u32 %s9, 4
          %s464 = int_to_ptr.hbm [resolvable:$true] %s463
          %s465 = sshll.u32 [#allocation13], 4
          %s466 = int_to_ptr.vmem [resolvable:$true] %s465
          %468 = dma.hbm_to_vmem [thread:$0]  %s464, 16, %s466, [#allocation12]
        $region40: #{tpu_custom_call.1} parent=11 // pred_fallthru
          _
        // Predicated region
        $region41: #{tpu_custom_call.1} parent=11 // pred_check
          %p469 = pneg %p275
        $region42: #{tpu_custom_call.1} parent=11 // pred_check_branch
          %471 = sbr.rel (%p469) target = $region44
        $region43: #{tpu_custom_call.1} parent=11 // pred_region
          %473 = vsyncadd [#allocation15], 0
          %s474 = sshll.u32 %s10, 4
          %s475 = int_to_ptr.hbm [resolvable:$true] %s474
          %s476 = sshll.u32 [#allocation14], 4
          %s477 = int_to_ptr.vmem [resolvable:$true] %s476
          %482 = dma.hbm_to_vmem [thread:$0]  %s475, 2048, %s477, [#allocation15], 128, 128, 8
        $region44: #{tpu_custom_call.1} parent=11 // pred_fallthru
          _
        // Predicated region
        $region45: #{tpu_custom_call.1} parent=11 // pred_check
          %p483 = pneg %p296
        $region46: #{tpu_custom_call.1} parent=11 // pred_check_branch
          %485 = sbr.rel (%p483) target = $region48
        $region47: #{tpu_custom_call.1} parent=11 // pred_region
          %487 = vsyncadd [#allocation15], 0
          %s489 = sshll.u32 %s11, 4
          %s490 = int_to_ptr.hbm [resolvable:$true] %s489
          %s491 = sshll.u32 [#allocation16], 4
          %s492 = int_to_ptr.vmem [resolvable:$true] %s491
          %494 = dma.hbm_to_vmem [thread:$0]  %s490, 16, %s492, [#allocation15]
        $region48: #{tpu_custom_call.1} parent=11 // pred_fallthru
          _
        // Predicated region
        $region49: #{tpu_custom_call.1} parent=11 // pred_check
          %p495 = pneg %p317
        $region50: #{tpu_custom_call.1} parent=11 // pred_check_branch
          %497 = sbr.rel (%p495) target = $region52
        $region51: #{tpu_custom_call.1} parent=11 // pred_region
          _
        $region52: #{tpu_custom_call.1} parent=11 // pred_fallthru
          _
        // Predicated region
        $region53: #{tpu_custom_call.1} parent=11 // pred_check
          %p498 = pneg %p338
        $region54: #{tpu_custom_call.1} parent=11 // pred_check_branch
          %500 = sbr.rel (%p498) target = $region56
        $region55: #{tpu_custom_call.1} parent=11 // pred_region
          %502 = vsyncadd [#allocation18], 0
          %s504 = sshll.u32 %s13, 4
          %s505 = int_to_ptr.hbm [resolvable:$true] %s504
          %s506 = sshll.u32 [#allocation17], 4
          %s507 = int_to_ptr.vmem [resolvable:$true] %s506
          %509 = dma.hbm_to_vmem [thread:$0]  %s505, 16, %s507, [#allocation18]
        $region56: #{tpu_custom_call.1} parent=11 // pred_fallthru
          _
      $region12: #{tpu_custom_call.1} parent=5 // pred_fallthru
        _
      %p510 = scmp.lt.s32.totalorder %s29, 2
      // Predicated region
      $region57: #{tpu_custom_call.1} parent=5 // pred_check
        %p511 = pneg %p510
      $region58: #{tpu_custom_call.1} parent=5 // pred_check_branch
        %513 = sbr.rel (%p511) target = $region60
      $region59: #{tpu_custom_call.1} parent=5 // pred_region
        // Predicated region
        $region61: #{tpu_custom_call.1} parent=59 // pred_check
          %p514 = pneg %p49
        $region62: #{tpu_custom_call.1} parent=59 // pred_check_branch
          %516 = sbr.rel (%p514) target = $region64
        $region63: #{tpu_custom_call.1} parent=59 // pred_region
          %p517 = scmp.lt.s32.totalorder %s29, 1
          %s518 = scalar_select %p517, %s29, 1
          %s519 = smul.addr %s518, 4
          %s520 = smul.addr %s519, 8
          %s521 = scalar_lea.vmem %s0, %s520
        $region64: #{tpu_custom_call.1} parent=59 // pred_fallthru
          _
        // Predicated region
        $region65: #{tpu_custom_call.1} parent=59 // pred_check
          %p522 = pneg %p75
        $region66: #{tpu_custom_call.1} parent=59 // pred_check_branch
          %524 = sbr.rel (%p522) target = $region68
        $region67: #{tpu_custom_call.1} parent=59 // pred_region
          %p525 = scmp.lt.s32.totalorder %s29, 1
          %s526 = scalar_select %p525, %s29, 1
          %s527 = smul.addr %s526, 8
          %s528 = smul.addr %s527, 8
          %s529 = scalar_lea.vmem %s1, %s528
        $region68: #{tpu_custom_call.1} parent=59 // pred_fallthru
          _
        // Predicated region
        $region69: #{tpu_custom_call.1} parent=59 // pred_check
          %p530 = pneg %p101
        $region70: #{tpu_custom_call.1} parent=59 // pred_check_branch
          %532 = sbr.rel (%p530) target = $region72
        $region71: #{tpu_custom_call.1} parent=59 // pred_region
          %p533 = scmp.lt.s32.totalorder %s29, 1
          %s534 = scalar_select %p533, %s29, 1
          %s535 = smul.addr %s534, 8
          %s536 = smul.addr %s535, 8
          %s537 = scalar_lea.vmem %s2, %s536
        $region72: #{tpu_custom_call.1} parent=59 // pred_fallthru
          _
      $region60: #{tpu_custom_call.1} parent=5 // pred_fallthru
        _
      %p538 = scmp.le.s32.totalorder 1, %s29
      %p539 = scmp.lt.s32.totalorder %s29, 3
      %p540 = pnand %p538, %p539
      %p541 = pneg %p540
      // Predicated region
      $region73: #{tpu_custom_call.1} parent=5 // pred_check
        _
      $region74: #{tpu_custom_call.1} parent=5 // pred_check_branch
        %543 = sbr.rel (%p540) target = $region76
      $region75: #{tpu_custom_call.1} parent=5 // pred_region
        %s544 = ssub.s32 %s29, 1
        // Predicated region
        $region77: #{tpu_custom_call.1} parent=75 // pred_check
          %p545 = pneg %p128
        $region78: #{tpu_custom_call.1} parent=75 // pred_check_branch
          %547 = sbr.rel (%p545) target = $region80
        $region79: #{tpu_custom_call.1} parent=75 // pred_region
          %549 = dma.done [#allocation3], 64
        $region80: #{tpu_custom_call.1} parent=75 // pred_fallthru
          _
        // Predicated region
        $region81: #{tpu_custom_call.1} parent=75 // pred_check
          %p550 = pneg %p149
        $region82: #{tpu_custom_call.1} parent=75 // pred_check_branch
          %552 = sbr.rel (%p550) target = $region84
        $region83: #{tpu_custom_call.1} parent=75 // pred_region
          %554 = dma.done [#allocation6], 32
        $region84: #{tpu_custom_call.1} parent=75 // pred_fallthru
          _
        // Predicated region
        $region85: #{tpu_custom_call.1} parent=75 // pred_check
          %p555 = pneg %p170
        $region86: #{tpu_custom_call.1} parent=75 // pred_check_branch
          %557 = sbr.rel (%p555) target = $region88
        $region87: #{tpu_custom_call.1} parent=75 // pred_region
          %559 = dma.done [#allocation6], 40960
        $region88: #{tpu_custom_call.1} parent=75 // pred_fallthru
          _
        // Predicated region
        $region89: #{tpu_custom_call.1} parent=75 // pred_check
          %p560 = pneg %p191
        $region90: #{tpu_custom_call.1} parent=75 // pred_check_branch
          %562 = sbr.rel (%p560) target = $region92
        $region91: #{tpu_custom_call.1} parent=75 // pred_region
          %564 = dma.done [#allocation9], 160
        $region92: #{tpu_custom_call.1} parent=75 // pred_fallthru
          _
        // Predicated region
        $region93: #{tpu_custom_call.1} parent=75 // pred_check
          %p565 = pneg %p212
        $region94: #{tpu_custom_call.1} parent=75 // pred_check_branch
          %567 = sbr.rel (%p565) target = $region96
        $region95: #{tpu_custom_call.1} parent=75 // pred_region
          %569 = dma.done [#allocation9], 4096
        $region96: #{tpu_custom_call.1} parent=75 // pred_fallthru
          _
        // Predicated region
        $region97: #{tpu_custom_call.1} parent=75 // pred_check
          %p570 = pneg %p233
        $region98: #{tpu_custom_call.1} parent=75 // pred_check_branch
          %572 = sbr.rel (%p570) target = $region100
        $region99: #{tpu_custom_call.1} parent=75 // pred_region
          %574 = dma.done [#allocation12], 16
        $region100: #{tpu_custom_call.1} parent=75 // pred_fallthru
          _
        // Predicated region
        $region101: #{tpu_custom_call.1} parent=75 // pred_check
          %p575 = pneg %p254
        $region102: #{tpu_custom_call.1} parent=75 // pred_check_branch
          %577 = sbr.rel (%p575) target = $region104
        $region103: #{tpu_custom_call.1} parent=75 // pred_region
          %579 = dma.done [#allocation12], 16
        $region104: #{tpu_custom_call.1} parent=75 // pred_fallthru
          _
        // Predicated region
        $region105: #{tpu_custom_call.1} parent=75 // pred_check
          %p580 = pneg %p275
        $region106: #{tpu_custom_call.1} parent=75 // pred_check_branch
          %582 = sbr.rel (%p580) target = $region108
        $region107: #{tpu_custom_call.1} parent=75 // pred_region
          %584 = dma.done [#allocation15], 2048
        $region108: #{tpu_custom_call.1} parent=75 // pred_fallthru
          _
        // Predicated region
        $region109: #{tpu_custom_call.1} parent=75 // pred_check
          %p585 = pneg %p296
        $region110: #{tpu_custom_call.1} parent=75 // pred_check_branch
          %587 = sbr.rel (%p585) target = $region112
        $region111: #{tpu_custom_call.1} parent=75 // pred_region
          %589 = dma.done [#allocation15], 16
        $region112: #{tpu_custom_call.1} parent=75 // pred_fallthru
          _
        // Predicated region
        $region113: #{tpu_custom_call.1} parent=75 // pred_check
          %p590 = pneg %p338
        $region114: #{tpu_custom_call.1} parent=75 // pred_check_branch
          %592 = sbr.rel (%p590) target = $region116
        $region115: #{tpu_custom_call.1} parent=75 // pred_region
          %594 = dma.done [#allocation18], 16
        $region116: #{tpu_custom_call.1} parent=75 // pred_fallthru
          _
        %p595 = scmp.lt.s32.totalorder %s34, 1
        %s596 = scalar_select %p595, %s34, 1
        %s597 = smul.addr %s596, 4
        %s598 = smul.addr %s597, 8
        %s599 = scalar_lea.vmem %s0, %s598
        %p600 = pneg %p55
        %p601 = pneg %p52
        %p602 = scmp.lt.s32.totalorder %s34, 1
        %s603 = scalar_select %p602, %s34, 1
        %s604 = smul.addr %s603, 8
        %s605 = smul.addr %s604, 8
        %s606 = scalar_lea.vmem %s1, %s605
        %p607 = pneg %p81
        %p608 = pneg %p78
        %p609 = scmp.lt.s32.totalorder %s34, 1
        %s610 = scalar_select %p609, %s34, 1
        %s611 = smul.addr %s610, 8
        %s612 = smul.addr %s611, 8
        %s613 = scalar_lea.vmem %s2, %s612
        %p614 = pneg %p107
        %p615 = pneg %p104
        %p616 = pneg %p128
        %p617 = pneg %p125
        %p618 = pneg %p149
        %p619 = pneg %p146
        %p620 = pneg %p170
        %p621 = pneg %p167
        %p622 = pneg %p191
        %p623 = pneg %p188
        %p624 = pneg %p212
        %p625 = pneg %p209
        %p626 = pneg %p233
        %p627 = pneg %p230
        %p628 = pneg %p254
        %p629 = pneg %p251
        %p630 = pneg %p275
        %p631 = pneg %p272
        %p632 = pneg %p296
        %p633 = pneg %p293
        %p634 = pneg %p317
        %p635 = pneg %p314
        %p636 = pneg %p338
        %p637 = pneg %p335
        %p638 = pneg %p364
        %p639 = pneg %p361
        %s640 = sand.u32 %s351, 1
        %s641 = scalar_lea.sflag [#allocation4], %s640
        %s642 = sand.u32 %s351, 1
        %s643 = smul.addr %s642, 4
        %s644 = scalar_lea.vmem [#allocation19], %s643
        %p645 = scmp.lt.s32.totalorder %s34, 1
        %s646 = scalar_select %p645, %s34, 1
        %s647 = smul.addr %s646, 4
        %s648 = smul.addr %s647, 8
        %s649 = scalar_lea.vmem %s0, %s648
        %p650 = scmp.lt.s32.totalorder %s34, 1
        %s651 = scalar_select %p650, %s34, 1
        %s652 = smul.addr %s651, 8
        %s653 = smul.addr %s652, 8
        %s654 = scalar_lea.vmem %s1, %s653
        %p655 = scmp.lt.s32.totalorder %s34, 1
        %s656 = scalar_select %p655, %s34, 1
        %s657 = smul.addr %s656, 8
        %s658 = smul.addr %s657, 8
        %s659 = scalar_lea.vmem %s2, %s658
        %v660 = vld [vmem:[%s649] sm:$0xff]
        %v661 = vld [vmem:[%s649 + $0x8] sm:$0xff]
        %v662 = vld [vmem:[%s649 + $0x10] sm:$0xff]
        %v663 = vld [vmem:[%s649 + $0x18] sm:$0xff]
        %v664 = vld [vmem:[%s654] sm:$0xff]
        %v665 = vld [vmem:[%s654 + $0x8] sm:$0xff]
        %v666 = vld [vmem:[%s654 + $0x10] sm:$0xff]
        %v667 = vld [vmem:[%s654 + $0x18] sm:$0xff]
        %v668 = vld [vmem:[%s654 + $0x20] sm:$0xff]
        %v669 = vld [vmem:[%s654 + $0x28] sm:$0xff]
        %v670 = vld [vmem:[%s654 + $0x30] sm:$0xff]
        %v671 = vld [vmem:[%s654 + $0x38] sm:$0xff]
        %v672 = vld [vmem:[%s659] sm:$0xff]
        %v673 = vld [vmem:[%s659 + $0x8] sm:$0xff]
        %v674 = vld [vmem:[%s659 + $0x10] sm:$0xff]
        %v675 = vld [vmem:[%s659 + $0x18] sm:$0xff]
        %v676 = vld [vmem:[%s659 + $0x20] sm:$0xff]
        %v677 = vld [vmem:[%s659 + $0x28] sm:$0xff]
        %v678 = vld [vmem:[%s659 + $0x30] sm:$0xff]
        %v679 = vld [vmem:[%s659 + $0x38] sm:$0xff]
        %v680 = vld [vmem:[#allocation2] sm:$0xf]
        %682 = vset.pattern.permute.xlu0 0
        %683 = vperm.xlu0 %682, %v660
        %v684 = vpop.permute.xlu0 %683
        %687 = vset.pattern.permute.xlu0 0
        %688 = vperm.xlu0 %687, %v661
        %v689 = vpop.permute.xlu0 %688
        %692 = vset.pattern.permute.xlu0 0
        %693 = vperm.xlu0 %692, %v662
        %v694 = vpop.permute.xlu0 %693
        %697 = vset.pattern.permute.xlu0 0
        %698 = vperm.xlu0 %697, %v663
        %v699 = vpop.permute.xlu0 %698
        %v702 = vperm.slane %v680, 0
        %v703 = vperm.slane %v680, 2
        %v706 = vperm.slane %v702, 0
        %v707 = vperm.slane %v703, 0
        %v708 = vmul.f32 %v684, %v706
        %v709 = vmul.f32 %v684, %v707
        %v710 = vmul.f32 %v689, %v706
        %v711 = vmul.f32 %v689, %v707
        %v712 = vmul.f32 %v694, %v706
        %v713 = vmul.f32 %v694, %v707
        %v714 = vmul.f32 %v699, %v706
        %v715 = vmul.f32 %v699, %v707
        %716 = vset.pattern.permute.xlu0 1
        %717 = vperm.xlu0 %716, %v660
        %v718 = vpop.permute.xlu0 %717
        %720 = vset.pattern.permute.xlu0 1
        %721 = vperm.xlu0 %720, %v661
        %v722 = vpop.permute.xlu0 %721
        %724 = vset.pattern.permute.xlu0 1
        %725 = vperm.xlu0 %724, %v662
        %v726 = vpop.permute.xlu0 %725
        %728 = vset.pattern.permute.xlu0 1
        %729 = vperm.xlu0 %728, %v663
        %v730 = vpop.permute.xlu0 %729
        %v732 = vperm.slane %v680, 1
        %v733 = vperm.slane %v680, 3
        %v736 = vperm.slane %v732, 1
        %v737 = vperm.slane %v733, 1
        %v738 = vmul.f32 %v718, %v736
        %v739 = vmul.f32 %v718, %v737
        %v740 = vmul.f32 %v722, %v736
        %v741 = vmul.f32 %v722, %v737
        %v742 = vmul.f32 %v726, %v736
        %v743 = vmul.f32 %v726, %v737
        %v744 = vmul.f32 %v730, %v736
        %v745 = vmul.f32 %v730, %v737
        %v746 = vadd.f32 %v708, %v738
        %v747 = vadd.f32 %v709, %v739
        %v748 = vadd.f32 %v710, %v740
        %v749 = vadd.f32 %v711, %v741
        %v750 = vadd.f32 %v712, %v742
        %v751 = vadd.f32 %v713, %v743
        %v752 = vadd.f32 %v714, %v744
        %v753 = vadd.f32 %v715, %v745
        %v754 = vld [vmem:[#allocation5] sm:$0x3]
        %v756 = vperm.slane %v754, 0
        %v757 = vperm.slane %v754, 1
        %v760 = vadd.f32 %v746, %v756
        %v761 = vadd.f32 %v747, %v757
        %v762 = vadd.f32 %v748, %v756
        %v763 = vadd.f32 %v749, %v757
        %v764 = vadd.f32 %v750, %v756
        %v765 = vadd.f32 %v751, %v757
        %v766 = vadd.f32 %v752, %v756
        %v767 = vadd.f32 %v753, %v757
        %v768 = vmax.f32 %v760, 0.0
        %v769 = vmax.f32 %v761, 0.0
        %v770 = vmax.f32 %v762, 0.0
        %v771 = vmax.f32 %v763, 0.0
        %v772 = vmax.f32 %v764, 0.0
        %v773 = vmax.f32 %v765, 0.0
        %v774 = vmax.f32 %v766, 0.0
        %v775 = vmax.f32 %v767, 0.0
        %v776 = vld [vmem:[#allocation7] sm:$0xff]
        %v777 = vld [vmem:[#allocation7 + $0x8] sm:$0xff]
        %v778 = vld [vmem:[#allocation7 + $0x10] sm:$0xff]
        %v779 = vld [vmem:[#allocation7 + $0x18] sm:$0xff]
        %v780 = vld [vmem:[#allocation7 + $0x20] sm:$0xff]
        %v781 = vld [vmem:[#allocation7 + $0x28] sm:$0xff]
        %v782 = vld [vmem:[#allocation7 + $0x30] sm:$0xff]
        %v783 = vld [vmem:[#allocation7 + $0x38] sm:$0xff]
        %v784 = vld [vmem:[#allocation7 + $0x40] sm:$0xff]
        %v785 = vld [vmem:[#allocation7 + $0x48] sm:$0xff]
        %v786 = vld [vmem:[#allocation7 + $0x50] sm:$0xff]
        %v787 = vld [vmem:[#allocation7 + $0x58] sm:$0xff]
        %v788 = vld [vmem:[#allocation7 + $0x60] sm:$0xff]
        %v789 = vld [vmem:[#allocation7 + $0x68] sm:$0xff]
        %v790 = vld [vmem:[#allocation7 + $0x70] sm:$0xff]
        %v791 = vld [vmem:[#allocation7 + $0x78] sm:$0xff]
        %v792 = vld [vmem:[#allocation7 + $0x80] sm:$0xff]
        %v793 = vld [vmem:[#allocation7 + $0x88] sm:$0xff]
        %v794 = vld [vmem:[#allocation7 + $0x90] sm:$0xff]
        %v795 = vld [vmem:[#allocation7 + $0x98] sm:$0xff]
        %v796 = vld [vmem:[#allocation7 + $0xa0] sm:$0xff]
        %v797 = vld [vmem:[#allocation7 + $0xa8] sm:$0xff]
        %v798 = vld [vmem:[#allocation7 + $0xb0] sm:$0xff]
        %v799 = vld [vmem:[#allocation7 + $0xb8] sm:$0xff]
        %v800 = vld [vmem:[#allocation7 + $0xc0] sm:$0xff]
        %v801 = vld [vmem:[#allocation7 + $0xc8] sm:$0xff]
        %v802 = vld [vmem:[#allocation7 + $0xd0] sm:$0xff]
        %v803 = vld [vmem:[#allocation7 + $0xd8] sm:$0xff]
        %v804 = vld [vmem:[#allocation7 + $0xe0] sm:$0xff]
        %v805 = vld [vmem:[#allocation7 + $0xe8] sm:$0xff]
        %v806 = vld [vmem:[#allocation7 + $0xf0] sm:$0xff]
        %v807 = vld [vmem:[#allocation7 + $0xf8] sm:$0xff]
        %v808 = vld [vmem:[#allocation7 + $0x100] sm:$0xff]
        %v809 = vld [vmem:[#allocation7 + $0x108] sm:$0xff]
        %v810 = vld [vmem:[#allocation7 + $0x110] sm:$0xff]
        %v811 = vld [vmem:[#allocation7 + $0x118] sm:$0xff]
        %v812 = vld [vmem:[#allocation7 + $0x120] sm:$0xff]
        %v813 = vld [vmem:[#allocation7 + $0x128] sm:$0xff]
        %v814 = vld [vmem:[#allocation7 + $0x130] sm:$0xff]
        %v815 = vld [vmem:[#allocation7 + $0x138] sm:$0xff]
        %v816 = vld [vmem:[#allocation7 + $0x140] sm:$0xff]
        %v817 = vld [vmem:[#allocation7 + $0x148] sm:$0xff]
        %v818 = vld [vmem:[#allocation7 + $0x150] sm:$0xff]
        %v819 = vld [vmem:[#allocation7 + $0x158] sm:$0xff]
        %v820 = vld [vmem:[#allocation7 + $0x160] sm:$0xff]
        %v821 = vld [vmem:[#allocation7 + $0x168] sm:$0xff]
        %v822 = vld [vmem:[#allocation7 + $0x170] sm:$0xff]
        %v823 = vld [vmem:[#allocation7 + $0x178] sm:$0xff]
        %v824 = vld [vmem:[#allocation7 + $0x180] sm:$0xff]
        %v825 = vld [vmem:[#allocation7 + $0x188] sm:$0xff]
        %v826 = vld [vmem:[#allocation7 + $0x190] sm:$0xff]
        %v827 = vld [vmem:[#allocation7 + $0x198] sm:$0xff]
        %v828 = vld [vmem:[#allocation7 + $0x1a0] sm:$0xff]
        %v829 = vld [vmem:[#allocation7 + $0x1a8] sm:$0xff]
        %v830 = vld [vmem:[#allocation7 + $0x1b0] sm:$0xff]
        %v831 = vld [vmem:[#allocation7 + $0x1b8] sm:$0xff]
        %v832 = vld [vmem:[#allocation7 + $0x1c0] sm:$0xff]
        %v833 = vld [vmem:[#allocation7 + $0x1c8] sm:$0xff]
        %v834 = vld [vmem:[#allocation7 + $0x1d0] sm:$0xff]
        %v835 = vld [vmem:[#allocation7 + $0x1d8] sm:$0xff]
        %v836 = vld [vmem:[#allocation7 + $0x1e0] sm:$0xff]
        %v837 = vld [vmem:[#allocation7 + $0x1e8] sm:$0xff]
        %v838 = vld [vmem:[#allocation7 + $0x1f0] sm:$0xff]
        %v839 = vld [vmem:[#allocation7 + $0x1f8] sm:$0xff]
        %v840 = vld [vmem:[#allocation8] sm:$0x3]
        %v842 = vperm.slane %v840, 0
        %v843 = vperm.slane %v840, 1
        %846 = vmatpush.msra.mxu0 %v806
        %847 = vmatpush.msra.mxu0 %v804
        %848 = vmatpush.msra.mxu0 %v802
        %849 = vmatpush.msra.mxu0 %v800
        %850 = vmatpush.msra.mxu0 %v798
        %851 = vmatpush.msra.mxu0 %v796
        %852 = vmatpush.msra.mxu0 %v794
        %853 = vmatpush.msra.mxu0 %v792
        %854 = vmatpush.msra.mxu0 %v790
        %855 = vmatpush.msra.mxu0 %v788
        %856 = vmatpush.msra.mxu0 %v786
        %857 = vmatpush.msra.mxu0 %v784
        %858 = vmatpush.msra.mxu0 %v782
        %859 = vmatpush.msra.mxu0 %v780
        %860 = vmatpush.msra.mxu0 %v778
        %861 = vmatpush.msra.mxu0 %v776
        %862 = vmatmul.f32.gmra.mxu0 %v768
        %v863 = vpop.f32.mrf.mxu0
        %v864 = vadd.f32 %v842, %v863
        %865 = vmatmul.f32.gmra.mxu0 %v770
        %v866 = vpop.f32.mrf.mxu0
        %v867 = vadd.f32 %v842, %v866
        %868 = vmatmul.f32.gmra.mxu0 %v772
        %v869 = vpop.f32.mrf.mxu0
        %v870 = vadd.f32 %v842, %v869
        %871 = vmatmul.f32.gmra.mxu0 %v774
        %v872 = vpop.f32.mrf.mxu0
        %v873 = vadd.f32 %v842, %v872
        %874 = vdwg.mxu0
        %875 = vmatpush.msra.mxu0 %v838
        %876 = vmatpush.msra.mxu0 %v836
        %877 = vmatpush.msra.mxu0 %v834
        %878 = vmatpush.msra.mxu0 %v832
        %879 = vmatpush.msra.mxu0 %v830
        %880 = vmatpush.msra.mxu0 %v828
        %881 = vmatpush.msra.mxu0 %v826
        %882 = vmatpush.msra.mxu0 %v824
        %883 = vmatpush.msra.mxu0 %v822
        %884 = vmatpush.msra.mxu0 %v820
        %885 = vmatpush.msra.mxu0 %v818
        %886 = vmatpush.msra.mxu0 %v816
        %887 = vmatpush.msra.mxu0 %v814
        %888 = vmatpush.msra.mxu0 %v812
        %889 = vmatpush.msra.mxu0 %v810
        %890 = vmatpush.msra.mxu0 %v808
        %891 = vmatmul.f32.gmra.mxu0 %v769
        %v892 = vpop.f32.mrf.mxu0
        %v893 = vadd.f32 %v864, %v892
        %894 = vmatmul.f32.gmra.mxu0 %v771
        %v895 = vpop.f32.mrf.mxu0
        %v896 = vadd.f32 %v867, %v895
        %897 = vmatmul.f32.gmra.mxu0 %v773
        %v898 = vpop.f32.mrf.mxu0
        %v899 = vadd.f32 %v870, %v898
        %900 = vmatmul.f32.gmra.mxu0 %v775
        %v901 = vpop.f32.mrf.mxu0
        %v902 = vadd.f32 %v873, %v901
        %903 = vdwg.mxu0
        %904 = vmatpush.msra.mxu0 %v807
        %905 = vmatpush.msra.mxu0 %v805
        %906 = vmatpush.msra.mxu0 %v803
        %907 = vmatpush.msra.mxu0 %v801
        %908 = vmatpush.msra.mxu0 %v799
        %909 = vmatpush.msra.mxu0 %v797
        %910 = vmatpush.msra.mxu0 %v795
        %911 = vmatpush.msra.mxu0 %v793
        %912 = vmatpush.msra.mxu0 %v791
        %913 = vmatpush.msra.mxu0 %v789
        %914 = vmatpush.msra.mxu0 %v787
        %915 = vmatpush.msra.mxu0 %v785
        %916 = vmatpush.msra.mxu0 %v783
        %917 = vmatpush.msra.mxu0 %v781
        %918 = vmatpush.msra.mxu0 %v779
        %919 = vmatpush.msra.mxu0 %v777
        %920 = vmatmul.f32.gmra.mxu0 %v768
        %v921 = vpop.f32.mrf.mxu0
        %v922 = vadd.f32 %v843, %v921
        %923 = vmatmul.f32.gmra.mxu0 %v770
        %v924 = vpop.f32.mrf.mxu0
        %v925 = vadd.f32 %v843, %v924
        %926 = vmatmul.f32.gmra.mxu0 %v772
        %v927 = vpop.f32.mrf.mxu0
        %v928 = vadd.f32 %v843, %v927
        %929 = vmatmul.f32.gmra.mxu0 %v774
        %v930 = vpop.f32.mrf.mxu0
        %v931 = vadd.f32 %v843, %v930
        %932 = vdwg.mxu0
        %933 = vmatpush.msra.mxu0 %v839
        %934 = vmatpush.msra.mxu0 %v837
        %935 = vmatpush.msra.mxu0 %v835
        %936 = vmatpush.msra.mxu0 %v833
        %937 = vmatpush.msra.mxu0 %v831
        %938 = vmatpush.msra.mxu0 %v829
        %939 = vmatpush.msra.mxu0 %v827
        %940 = vmatpush.msra.mxu0 %v825
        %941 = vmatpush.msra.mxu0 %v823
        %942 = vmatpush.msra.mxu0 %v821
        %943 = vmatpush.msra.mxu0 %v819
        %944 = vmatpush.msra.mxu0 %v817
        %945 = vmatpush.msra.mxu0 %v815
        %946 = vmatpush.msra.mxu0 %v813
        %947 = vmatpush.msra.mxu0 %v811
        %948 = vmatpush.msra.mxu0 %v809
        %949 = vmatmul.f32.gmra.mxu0 %v769
        %v950 = vpop.f32.mrf.mxu0
        %v951 = vadd.f32 %v922, %v950
        %952 = vmatmul.f32.gmra.mxu0 %v771
        %v953 = vpop.f32.mrf.mxu0
        %v954 = vadd.f32 %v925, %v953
        %955 = vmatmul.f32.gmra.mxu0 %v773
        %v956 = vpop.f32.mrf.mxu0
        %v957 = vadd.f32 %v928, %v956
        %958 = vmatmul.f32.gmra.mxu0 %v775
        %v959 = vpop.f32.mrf.mxu0
        %v960 = vadd.f32 %v931, %v959
        %961 = vdwg.mxu0
        %v962 = vmax.f32 %v893, 0.0
        %v963 = vmax.f32 %v951, 0.0
        %v964 = vmax.f32 %v896, 0.0
        %v965 = vmax.f32 %v954, 0.0
        %v966 = vmax.f32 %v899, 0.0
        %v967 = vmax.f32 %v957, 0.0
        %v968 = vmax.f32 %v902, 0.0
        %v969 = vmax.f32 %v960, 0.0
        %s970 = scalar_lea.vmem [#allocation7], 512
        %v971 = vld [vmem:[%s970] sm:$0xff]
        %v972 = vld [vmem:[%s970 + $0x8] sm:$0xff]
        %v973 = vld [vmem:[%s970 + $0x10] sm:$0xff]
        %v974 = vld [vmem:[%s970 + $0x18] sm:$0xff]
        %v975 = vld [vmem:[%s970 + $0x20] sm:$0xff]
        %v976 = vld [vmem:[%s970 + $0x28] sm:$0xff]
        %v977 = vld [vmem:[%s970 + $0x30] sm:$0xff]
        %v978 = vld [vmem:[%s970 + $0x38] sm:$0xff]
        %v979 = vld [vmem:[%s970 + $0x40] sm:$0xff]
        %v980 = vld [vmem:[%s970 + $0x48] sm:$0xff]
        %v981 = vld [vmem:[%s970 + $0x50] sm:$0xff]
        %v982 = vld [vmem:[%s970 + $0x58] sm:$0xff]
        %v983 = vld [vmem:[%s970 + $0x60] sm:$0xff]
        %v984 = vld [vmem:[%s970 + $0x68] sm:$0xff]
        %v985 = vld [vmem:[%s970 + $0x70] sm:$0xff]
        %v986 = vld [vmem:[%s970 + $0x78] sm:$0xff]
        %v987 = vld [vmem:[%s970 + $0x80] sm:$0xff]
        %v988 = vld [vmem:[%s970 + $0x88] sm:$0xff]
        %v989 = vld [vmem:[%s970 + $0x90] sm:$0xff]
        %v990 = vld [vmem:[%s970 + $0x98] sm:$0xff]
        %v991 = vld [vmem:[%s970 + $0xa0] sm:$0xff]
        %v992 = vld [vmem:[%s970 + $0xa8] sm:$0xff]
        %v993 = vld [vmem:[%s970 + $0xb0] sm:$0xff]
        %v994 = vld [vmem:[%s970 + $0xb8] sm:$0xff]
        %v995 = vld [vmem:[%s970 + $0xc0] sm:$0xff]
        %v996 = vld [vmem:[%s970 + $0xc8] sm:$0xff]
        %v997 = vld [vmem:[%s970 + $0xd0] sm:$0xff]
        %v998 = vld [vmem:[%s970 + $0xd8] sm:$0xff]
        %v999 = vld [vmem:[%s970 + $0xe0] sm:$0xff]
        %v1000 = vld [vmem:[%s970 + $0xe8] sm:$0xff]
        %v1001 = vld [vmem:[%s970 + $0xf0] sm:$0xff]
        %v1002 = vld [vmem:[%s970 + $0xf8] sm:$0xff]
        %v1003 = vld [vmem:[%s970 + $0x100] sm:$0xff]
        %v1004 = vld [vmem:[%s970 + $0x108] sm:$0xff]
        %v1005 = vld [vmem:[%s970 + $0x110] sm:$0xff]
        %v1006 = vld [vmem:[%s970 + $0x118] sm:$0xff]
        %v1007 = vld [vmem:[%s970 + $0x120] sm:$0xff]
        %v1008 = vld [vmem:[%s970 + $0x128] sm:$0xff]
        %v1009 = vld [vmem:[%s970 + $0x130] sm:$0xff]
        %v1010 = vld [vmem:[%s970 + $0x138] sm:$0xff]
        %v1011 = vld [vmem:[%s970 + $0x140] sm:$0xff]
        %v1012 = vld [vmem:[%s970 + $0x148] sm:$0xff]
        %v1013 = vld [vmem:[%s970 + $0x150] sm:$0xff]
        %v1014 = vld [vmem:[%s970 + $0x158] sm:$0xff]
        %v1015 = vld [vmem:[%s970 + $0x160] sm:$0xff]
        %v1016 = vld [vmem:[%s970 + $0x168] sm:$0xff]
        %v1017 = vld [vmem:[%s970 + $0x170] sm:$0xff]
        %v1018 = vld [vmem:[%s970 + $0x178] sm:$0xff]
        %v1019 = vld [vmem:[%s970 + $0x180] sm:$0xff]
        %v1020 = vld [vmem:[%s970 + $0x188] sm:$0xff]
        %v1021 = vld [vmem:[%s970 + $0x190] sm:$0xff]
        %v1022 = vld [vmem:[%s970 + $0x198] sm:$0xff]
        %v1023 = vld [vmem:[%s970 + $0x1a0] sm:$0xff]
        %v1024 = vld [vmem:[%s970 + $0x1a8] sm:$0xff]
        %v1025 = vld [vmem:[%s970 + $0x1b0] sm:$0xff]
        %v1026 = vld [vmem:[%s970 + $0x1b8] sm:$0xff]
        %v1027 = vld [vmem:[%s970 + $0x1c0] sm:$0xff]
        %v1028 = vld [vmem:[%s970 + $0x1c8] sm:$0xff]
        %v1029 = vld [vmem:[%s970 + $0x1d0] sm:$0xff]
        %v1030 = vld [vmem:[%s970 + $0x1d8] sm:$0xff]
        %v1031 = vld [vmem:[%s970 + $0x1e0] sm:$0xff]
        %v1032 = vld [vmem:[%s970 + $0x1e8] sm:$0xff]
        %v1033 = vld [vmem:[%s970 + $0x1f0] sm:$0xff]
        %v1034 = vld [vmem:[%s970 + $0x1f8] sm:$0xff]
        %s1035 = scalar_lea.vmem [#allocation8], 2
        %v1036 = vld [vmem:[%s1035] sm:$0x3]
        %v1038 = vperm.slane %v1036, 0
        %v1039 = vperm.slane %v1036, 1
        %1042 = vmatpush.msra.mxu0 %v1001
        %1043 = vmatpush.msra.mxu0 %v999
        %1044 = vmatpush.msra.mxu0 %v997
        %1045 = vmatpush.msra.mxu0 %v995
        %1046 = vmatpush.msra.mxu0 %v993
        %1047 = vmatpush.msra.mxu0 %v991
        %1048 = vmatpush.msra.mxu0 %v989
        %1049 = vmatpush.msra.mxu0 %v987
        %1050 = vmatpush.msra.mxu0 %v985
        %1051 = vmatpush.msra.mxu0 %v983
        %1052 = vmatpush.msra.mxu0 %v981
        %1053 = vmatpush.msra.mxu0 %v979
        %1054 = vmatpush.msra.mxu0 %v977
        %1055 = vmatpush.msra.mxu0 %v975
        %1056 = vmatpush.msra.mxu0 %v973
        %1057 = vmatpush.msra.mxu0 %v971
        %1058 = vmatmul.f32.gmra.mxu0 %v962
        %v1059 = vpop.f32.mrf.mxu0
        %v1060 = vadd.f32 %v1038, %v1059
        %1061 = vmatmul.f32.gmra.mxu0 %v964
        %v1062 = vpop.f32.mrf.mxu0
        %v1063 = vadd.f32 %v1038, %v1062
        %1064 = vmatmul.f32.gmra.mxu0 %v966
        %v1065 = vpop.f32.mrf.mxu0
        %v1066 = vadd.f32 %v1038, %v1065
        %1067 = vmatmul.f32.gmra.mxu0 %v968
        %v1068 = vpop.f32.mrf.mxu0
        %v1069 = vadd.f32 %v1038, %v1068
        %1070 = vdwg.mxu0
        %1071 = vmatpush.msra.mxu0 %v1033
        %1072 = vmatpush.msra.mxu0 %v1031
        %1073 = vmatpush.msra.mxu0 %v1029
        %1074 = vmatpush.msra.mxu0 %v1027
        %1075 = vmatpush.msra.mxu0 %v1025
        %1076 = vmatpush.msra.mxu0 %v1023
        %1077 = vmatpush.msra.mxu0 %v1021
        %1078 = vmatpush.msra.mxu0 %v1019
        %1079 = vmatpush.msra.mxu0 %v1017
        %1080 = vmatpush.msra.mxu0 %v1015
        %1081 = vmatpush.msra.mxu0 %v1013
        %1082 = vmatpush.msra.mxu0 %v1011
        %1083 = vmatpush.msra.mxu0 %v1009
        %1084 = vmatpush.msra.mxu0 %v1007
        %1085 = vmatpush.msra.mxu0 %v1005
        %1086 = vmatpush.msra.mxu0 %v1003
        %1087 = vmatmul.f32.gmra.mxu0 %v963
        %v1088 = vpop.f32.mrf.mxu0
        %v1089 = vadd.f32 %v1060, %v1088
        %1090 = vmatmul.f32.gmra.mxu0 %v965
        %v1091 = vpop.f32.mrf.mxu0
        %v1092 = vadd.f32 %v1063, %v1091
        %1093 = vmatmul.f32.gmra.mxu0 %v967
        %v1094 = vpop.f32.mrf.mxu0
        %v1095 = vadd.f32 %v1066, %v1094
        %1096 = vmatmul.f32.gmra.mxu0 %v969
        %v1097 = vpop.f32.mrf.mxu0
        %v1098 = vadd.f32 %v1069, %v1097
        %1099 = vdwg.mxu0
        %1100 = vmatpush.msra.mxu0 %v1002
        %1101 = vmatpush.msra.mxu0 %v1000
        %1102 = vmatpush.msra.mxu0 %v998
        %1103 = vmatpush.msra.mxu0 %v996
        %1104 = vmatpush.msra.mxu0 %v994
        %1105 = vmatpush.msra.mxu0 %v992
        %1106 = vmatpush.msra.mxu0 %v990
        %1107 = vmatpush.msra.mxu0 %v988
        %1108 = vmatpush.msra.mxu0 %v986
        %1109 = vmatpush.msra.mxu0 %v984
        %1110 = vmatpush.msra.mxu0 %v982
        %1111 = vmatpush.msra.mxu0 %v980
        %1112 = vmatpush.msra.mxu0 %v978
        %1113 = vmatpush.msra.mxu0 %v976
        %1114 = vmatpush.msra.mxu0 %v974
        %1115 = vmatpush.msra.mxu0 %v972
        %1116 = vmatmul.f32.gmra.mxu0 %v962
        %v1117 = vpop.f32.mrf.mxu0
        %v1118 = vadd.f32 %v1039, %v1117
        %1119 = vmatmul.f32.gmra.mxu0 %v964
        %v1120 = vpop.f32.mrf.mxu0
        %v1121 = vadd.f32 %v1039, %v1120
        %1122 = vmatmul.f32.gmra.mxu0 %v966
        %v1123 = vpop.f32.mrf.mxu0
        %v1124 = vadd.f32 %v1039, %v1123
        %1125 = vmatmul.f32.gmra.mxu0 %v968
        %v1126 = vpop.f32.mrf.mxu0
        %v1127 = vadd.f32 %v1039, %v1126
        %1128 = vdwg.mxu0
        %1129 = vmatpush.msra.mxu0 %v1034
        %1130 = vmatpush.msra.mxu0 %v1032
        %1131 = vmatpush.msra.mxu0 %v1030
        %1132 = vmatpush.msra.mxu0 %v1028
        %1133 = vmatpush.msra.mxu0 %v1026
        %1134 = vmatpush.msra.mxu0 %v1024
        %1135 = vmatpush.msra.mxu0 %v1022
        %1136 = vmatpush.msra.mxu0 %v1020
        %1137 = vmatpush.msra.mxu0 %v1018
        %1138 = vmatpush.msra.mxu0 %v1016
        %1139 = vmatpush.msra.mxu0 %v1014
        %1140 = vmatpush.msra.mxu0 %v1012
        %1141 = vmatpush.msra.mxu0 %v1010
        %1142 = vmatpush.msra.mxu0 %v1008
        %1143 = vmatpush.msra.mxu0 %v1006
        %1144 = vmatpush.msra.mxu0 %v1004
        %1145 = vmatmul.f32.gmra.mxu0 %v963
        %v1146 = vpop.f32.mrf.mxu0
        %v1147 = vadd.f32 %v1118, %v1146
        %1148 = vmatmul.f32.gmra.mxu0 %v965
        %v1149 = vpop.f32.mrf.mxu0
        %v1150 = vadd.f32 %v1121, %v1149
        %1151 = vmatmul.f32.gmra.mxu0 %v967
        %v1152 = vpop.f32.mrf.mxu0
        %v1153 = vadd.f32 %v1124, %v1152
        %1154 = vmatmul.f32.gmra.mxu0 %v969
        %v1155 = vpop.f32.mrf.mxu0
        %v1156 = vadd.f32 %v1127, %v1155
        %1157 = vdwg.mxu0
        %v1158 = vmax.f32 %v1089, 0.0
        %v1159 = vmax.f32 %v1147, 0.0
        %v1160 = vmax.f32 %v1092, 0.0
        %v1161 = vmax.f32 %v1150, 0.0
        %v1162 = vmax.f32 %v1095, 0.0
        %v1163 = vmax.f32 %v1153, 0.0
        %v1164 = vmax.f32 %v1098, 0.0
        %v1165 = vmax.f32 %v1156, 0.0
        %s1166 = scalar_lea.vmem [#allocation7], 1024
        %v1167 = vld [vmem:[%s1166] sm:$0xff]
        %v1168 = vld [vmem:[%s1166 + $0x8] sm:$0xff]
        %v1169 = vld [vmem:[%s1166 + $0x10] sm:$0xff]
        %v1170 = vld [vmem:[%s1166 + $0x18] sm:$0xff]
        %v1171 = vld [vmem:[%s1166 + $0x20] sm:$0xff]
        %v1172 = vld [vmem:[%s1166 + $0x28] sm:$0xff]
        %v1173 = vld [vmem:[%s1166 + $0x30] sm:$0xff]
        %v1174 = vld [vmem:[%s1166 + $0x38] sm:$0xff]
        %v1175 = vld [vmem:[%s1166 + $0x40] sm:$0xff]
        %v1176 = vld [vmem:[%s1166 + $0x48] sm:$0xff]
        %v1177 = vld [vmem:[%s1166 + $0x50] sm:$0xff]
        %v1178 = vld [vmem:[%s1166 + $0x58] sm:$0xff]
        %v1179 = vld [vmem:[%s1166 + $0x60] sm:$0xff]
        %v1180 = vld [vmem:[%s1166 + $0x68] sm:$0xff]
        %v1181 = vld [vmem:[%s1166 + $0x70] sm:$0xff]
        %v1182 = vld [vmem:[%s1166 + $0x78] sm:$0xff]
        %v1183 = vld [vmem:[%s1166 + $0x80] sm:$0xff]
        %v1184 = vld [vmem:[%s1166 + $0x88] sm:$0xff]
        %v1185 = vld [vmem:[%s1166 + $0x90] sm:$0xff]
        %v1186 = vld [vmem:[%s1166 + $0x98] sm:$0xff]
        %v1187 = vld [vmem:[%s1166 + $0xa0] sm:$0xff]
        %v1188 = vld [vmem:[%s1166 + $0xa8] sm:$0xff]
        %v1189 = vld [vmem:[%s1166 + $0xb0] sm:$0xff]
        %v1190 = vld [vmem:[%s1166 + $0xb8] sm:$0xff]
        %v1191 = vld [vmem:[%s1166 + $0xc0] sm:$0xff]
        %v1192 = vld [vmem:[%s1166 + $0xc8] sm:$0xff]
        %v1193 = vld [vmem:[%s1166 + $0xd0] sm:$0xff]
        %v1194 = vld [vmem:[%s1166 + $0xd8] sm:$0xff]
        %v1195 = vld [vmem:[%s1166 + $0xe0] sm:$0xff]
        %v1196 = vld [vmem:[%s1166 + $0xe8] sm:$0xff]
        %v1197 = vld [vmem:[%s1166 + $0xf0] sm:$0xff]
        %v1198 = vld [vmem:[%s1166 + $0xf8] sm:$0xff]
        %v1199 = vld [vmem:[%s1166 + $0x100] sm:$0xff]
        %v1200 = vld [vmem:[%s1166 + $0x108] sm:$0xff]
        %v1201 = vld [vmem:[%s1166 + $0x110] sm:$0xff]
        %v1202 = vld [vmem:[%s1166 + $0x118] sm:$0xff]
        %v1203 = vld [vmem:[%s1166 + $0x120] sm:$0xff]
        %v1204 = vld [vmem:[%s1166 + $0x128] sm:$0xff]
        %v1205 = vld [vmem:[%s1166 + $0x130] sm:$0xff]
        %v1206 = vld [vmem:[%s1166 + $0x138] sm:$0xff]
        %v1207 = vld [vmem:[%s1166 + $0x140] sm:$0xff]
        %v1208 = vld [vmem:[%s1166 + $0x148] sm:$0xff]
        %v1209 = vld [vmem:[%s1166 + $0x150] sm:$0xff]
        %v1210 = vld [vmem:[%s1166 + $0x158] sm:$0xff]
        %v1211 = vld [vmem:[%s1166 + $0x160] sm:$0xff]
        %v1212 = vld [vmem:[%s1166 + $0x168] sm:$0xff]
        %v1213 = vld [vmem:[%s1166 + $0x170] sm:$0xff]
        %v1214 = vld [vmem:[%s1166 + $0x178] sm:$0xff]
        %v1215 = vld [vmem:[%s1166 + $0x180] sm:$0xff]
        %v1216 = vld [vmem:[%s1166 + $0x188] sm:$0xff]
        %v1217 = vld [vmem:[%s1166 + $0x190] sm:$0xff]
        %v1218 = vld [vmem:[%s1166 + $0x198] sm:$0xff]
        %v1219 = vld [vmem:[%s1166 + $0x1a0] sm:$0xff]
        %v1220 = vld [vmem:[%s1166 + $0x1a8] sm:$0xff]
        %v1221 = vld [vmem:[%s1166 + $0x1b0] sm:$0xff]
        %v1222 = vld [vmem:[%s1166 + $0x1b8] sm:$0xff]
        %v1223 = vld [vmem:[%s1166 + $0x1c0] sm:$0xff]
        %v1224 = vld [vmem:[%s1166 + $0x1c8] sm:$0xff]
        %v1225 = vld [vmem:[%s1166 + $0x1d0] sm:$0xff]
        %v1226 = vld [vmem:[%s1166 + $0x1d8] sm:$0xff]
        %v1227 = vld [vmem:[%s1166 + $0x1e0] sm:$0xff]
        %v1228 = vld [vmem:[%s1166 + $0x1e8] sm:$0xff]
        %v1229 = vld [vmem:[%s1166 + $0x1f0] sm:$0xff]
        %v1230 = vld [vmem:[%s1166 + $0x1f8] sm:$0xff]
        %s1231 = scalar_lea.vmem [#allocation8], 4
        %v1232 = vld [vmem:[%s1231] sm:$0x3]
        %v1234 = vperm.slane %v1232, 0
        %v1235 = vperm.slane %v1232, 1
        %1238 = vmatpush.msra.mxu0 %v1197
        %1239 = vmatpush.msra.mxu0 %v1195
        %1240 = vmatpush.msra.mxu0 %v1193
        %1241 = vmatpush.msra.mxu0 %v1191
        %1242 = vmatpush.msra.mxu0 %v1189
        %1243 = vmatpush.msra.mxu0 %v1187
        %1244 = vmatpush.msra.mxu0 %v1185
        %1245 = vmatpush.msra.mxu0 %v1183
        %1246 = vmatpush.msra.mxu0 %v1181
        %1247 = vmatpush.msra.mxu0 %v1179
        %1248 = vmatpush.msra.mxu0 %v1177
        %1249 = vmatpush.msra.mxu0 %v1175
        %1250 = vmatpush.msra.mxu0 %v1173
        %1251 = vmatpush.msra.mxu0 %v1171
        %1252 = vmatpush.msra.mxu0 %v1169
        %1253 = vmatpush.msra.mxu0 %v1167
        %1254 = vmatmul.f32.gmra.mxu0 %v1158
        %v1255 = vpop.f32.mrf.mxu0
        %v1256 = vadd.f32 %v1234, %v1255
        %1257 = vmatmul.f32.gmra.mxu0 %v1160
        %v1258 = vpop.f32.mrf.mxu0
        %v1259 = vadd.f32 %v1234, %v1258
        %1260 = vmatmul.f32.gmra.mxu0 %v1162
        %v1261 = vpop.f32.mrf.mxu0
        %v1262 = vadd.f32 %v1234, %v1261
        %1263 = vmatmul.f32.gmra.mxu0 %v1164
        %v1264 = vpop.f32.mrf.mxu0
        %v1265 = vadd.f32 %v1234, %v1264
        %1266 = vdwg.mxu0
        %1267 = vmatpush.msra.mxu0 %v1229
        %1268 = vmatpush.msra.mxu0 %v1227
        %1269 = vmatpush.msra.mxu0 %v1225
        %1270 = vmatpush.msra.mxu0 %v1223
        %1271 = vmatpush.msra.mxu0 %v1221
        %1272 = vmatpush.msra.mxu0 %v1219
        %1273 = vmatpush.msra.mxu0 %v1217
        %1274 = vmatpush.msra.mxu0 %v1215
        %1275 = vmatpush.msra.mxu0 %v1213
        %1276 = vmatpush.msra.mxu0 %v1211
        %1277 = vmatpush.msra.mxu0 %v1209
        %1278 = vmatpush.msra.mxu0 %v1207
        %1279 = vmatpush.msra.mxu0 %v1205
        %1280 = vmatpush.msra.mxu0 %v1203
        %1281 = vmatpush.msra.mxu0 %v1201
        %1282 = vmatpush.msra.mxu0 %v1199
        %1283 = vmatmul.f32.gmra.mxu0 %v1159
        %v1284 = vpop.f32.mrf.mxu0
        %v1285 = vadd.f32 %v1256, %v1284
        %1286 = vmatmul.f32.gmra.mxu0 %v1161
        %v1287 = vpop.f32.mrf.mxu0
        %v1288 = vadd.f32 %v1259, %v1287
        %1289 = vmatmul.f32.gmra.mxu0 %v1163
        %v1290 = vpop.f32.mrf.mxu0
        %v1291 = vadd.f32 %v1262, %v1290
        %1292 = vmatmul.f32.gmra.mxu0 %v1165
        %v1293 = vpop.f32.mrf.mxu0
        %v1294 = vadd.f32 %v1265, %v1293
        %1295 = vdwg.mxu0
        %1296 = vmatpush.msra.mxu0 %v1198
        %1297 = vmatpush.msra.mxu0 %v1196
        %1298 = vmatpush.msra.mxu0 %v1194
        %1299 = vmatpush.msra.mxu0 %v1192
        %1300 = vmatpush.msra.mxu0 %v1190
        %1301 = vmatpush.msra.mxu0 %v1188
        %1302 = vmatpush.msra.mxu0 %v1186
        %1303 = vmatpush.msra.mxu0 %v1184
        %1304 = vmatpush.msra.mxu0 %v1182
        %1305 = vmatpush.msra.mxu0 %v1180
        %1306 = vmatpush.msra.mxu0 %v1178
        %1307 = vmatpush.msra.mxu0 %v1176
        %1308 = vmatpush.msra.mxu0 %v1174
        %1309 = vmatpush.msra.mxu0 %v1172
        %1310 = vmatpush.msra.mxu0 %v1170
        %1311 = vmatpush.msra.mxu0 %v1168
        %1312 = vmatmul.f32.gmra.mxu0 %v1158
        %v1313 = vpop.f32.mrf.mxu0
        %v1314 = vadd.f32 %v1235, %v1313
        %1315 = vmatmul.f32.gmra.mxu0 %v1160
        %v1316 = vpop.f32.mrf.mxu0
        %v1317 = vadd.f32 %v1235, %v1316
        %1318 = vmatmul.f32.gmra.mxu0 %v1162
        %v1319 = vpop.f32.mrf.mxu0
        %v1320 = vadd.f32 %v1235, %v1319
        %1321 = vmatmul.f32.gmra.mxu0 %v1164
        %v1322 = vpop.f32.mrf.mxu0
        %v1323 = vadd.f32 %v1235, %v1322
        %1324 = vdwg.mxu0
        %1325 = vmatpush.msra.mxu0 %v1230
        %1326 = vmatpush.msra.mxu0 %v1228
        %1327 = vmatpush.msra.mxu0 %v1226
        %1328 = vmatpush.msra.mxu0 %v1224
        %1329 = vmatpush.msra.mxu0 %v1222
        %1330 = vmatpush.msra.mxu0 %v1220
        %1331 = vmatpush.msra.mxu0 %v1218
        %1332 = vmatpush.msra.mxu0 %v1216
        %1333 = vmatpush.msra.mxu0 %v1214
        %1334 = vmatpush.msra.mxu0 %v1212
        %1335 = vmatpush.msra.mxu0 %v1210
        %1336 = vmatpush.msra.mxu0 %v1208
        %1337 = vmatpush.msra.mxu0 %v1206
        %1338 = vmatpush.msra.mxu0 %v1204
        %1339 = vmatpush.msra.mxu0 %v1202
        %1340 = vmatpush.msra.mxu0 %v1200
        %1341 = vmatmul.f32.gmra.mxu0 %v1159
        %v1342 = vpop.f32.mrf.mxu0
        %v1343 = vadd.f32 %v1314, %v1342
        %1344 = vmatmul.f32.gmra.mxu0 %v1161
        %v1345 = vpop.f32.mrf.mxu0
        %v1346 = vadd.f32 %v1317, %v1345
        %1347 = vmatmul.f32.gmra.mxu0 %v1163
        %v1348 = vpop.f32.mrf.mxu0
        %v1349 = vadd.f32 %v1320, %v1348
        %1350 = vmatmul.f32.gmra.mxu0 %v1165
        %v1351 = vpop.f32.mrf.mxu0
        %v1352 = vadd.f32 %v1323, %v1351
        %1353 = vdwg.mxu0
        %v1354 = vrot.slane %v1285, 4
        %v1355 = vadd.f32 %v1285, %v1354
        %v1356 = vrot.slane %v1355, 2
        %v1357 = vadd.f32 %v1355, %v1356
        %v1358 = vrot.slane %v1357, 1
        %v1359 = vadd.f32 %v1357, %v1358
        %v1360 = vrot.slane %v1343, 4
        %v1361 = vadd.f32 %v1343, %v1360
        %v1362 = vrot.slane %v1361, 2
        %v1363 = vadd.f32 %v1361, %v1362
        %v1364 = vrot.slane %v1363, 1
        %v1365 = vadd.f32 %v1363, %v1364
        %v1366 = vrot.slane %v1288, 4
        %v1367 = vadd.f32 %v1288, %v1366
        %v1368 = vrot.slane %v1367, 2
        %v1369 = vadd.f32 %v1367, %v1368
        %v1370 = vrot.slane %v1369, 1
        %v1371 = vadd.f32 %v1369, %v1370
        %v1372 = vrot.slane %v1346, 4
        %v1373 = vadd.f32 %v1346, %v1372
        %v1374 = vrot.slane %v1373, 2
        %v1375 = vadd.f32 %v1373, %v1374
        %v1376 = vrot.slane %v1375, 1
        %v1377 = vadd.f32 %v1375, %v1376
        %v1378 = vrot.slane %v1291, 4
        %v1379 = vadd.f32 %v1291, %v1378
        %v1380 = vrot.slane %v1379, 2
        %v1381 = vadd.f32 %v1379, %v1380
        %v1382 = vrot.slane %v1381, 1
        %v1383 = vadd.f32 %v1381, %v1382
        %v1384 = vrot.slane %v1349, 4
        %v1385 = vadd.f32 %v1349, %v1384
        %v1386 = vrot.slane %v1385, 2
        %v1387 = vadd.f32 %v1385, %v1386
        %v1388 = vrot.slane %v1387, 1
        %v1389 = vadd.f32 %v1387, %v1388
        %v1390 = vrot.slane %v1294, 4
        %v1391 = vadd.f32 %v1294, %v1390
        %v1392 = vrot.slane %v1391, 2
        %v1393 = vadd.f32 %v1391, %v1392
        %v1394 = vrot.slane %v1393, 1
        %v1395 = vadd.f32 %v1393, %v1394
        %v1396 = vrot.slane %v1352, 4
        %v1397 = vadd.f32 %v1352, %v1396
        %v1398 = vrot.slane %v1397, 2
        %v1399 = vadd.f32 %v1397, %v1398
        %v1400 = vrot.slane %v1399, 1
        %v1401 = vadd.f32 %v1399, %v1400
        %v1402 = vrcp.pop 8.0
        %v1403 = vmul.f32 8.0, %v1402
        %v1404 = vsub.f32 1.0, %v1403
        %v1405 = vmul.f32 %v1402, %v1404
        %v1406 = vadd.f32 %v1402, %v1405
        %vm1407 = vweird.f32 %v1402
        %v1408 = vsel %vm1407, %v1402, %v1406
        %v1409 = vmul.f32 %v1359, %v1408
        %v1410 = vmul.f32 %v1365, %v1408
        %v1411 = vmul.f32 %v1371, %v1408
        %v1412 = vmul.f32 %v1377, %v1408
        %v1413 = vmul.f32 %v1383, %v1408
        %v1414 = vmul.f32 %v1389, %v1408
        %v1415 = vmul.f32 %v1395, %v1408
        %v1416 = vmul.f32 %v1401, %v1408
        %s1417 = scalar_lea.vmem [#allocation7], 1536
        %v1418 = vld [vmem:[%s1417] sm:$0xff]
        %v1419 = vld [vmem:[%s1417 + $0x8] sm:$0xff]
        %v1420 = vld [vmem:[%s1417 + $0x10] sm:$0xff]
        %v1421 = vld [vmem:[%s1417 + $0x18] sm:$0xff]
        %v1422 = vld [vmem:[%s1417 + $0x20] sm:$0xff]
        %v1423 = vld [vmem:[%s1417 + $0x28] sm:$0xff]
        %v1424 = vld [vmem:[%s1417 + $0x30] sm:$0xff]
        %v1425 = vld [vmem:[%s1417 + $0x38] sm:$0xff]
        %v1426 = vld [vmem:[%s1417 + $0x40] sm:$0xff]
        %v1427 = vld [vmem:[%s1417 + $0x48] sm:$0xff]
        %v1428 = vld [vmem:[%s1417 + $0x50] sm:$0xff]
        %v1429 = vld [vmem:[%s1417 + $0x58] sm:$0xff]
        %v1430 = vld [vmem:[%s1417 + $0x60] sm:$0xff]
        %v1431 = vld [vmem:[%s1417 + $0x68] sm:$0xff]
        %v1432 = vld [vmem:[%s1417 + $0x70] sm:$0xff]
        %v1433 = vld [vmem:[%s1417 + $0x78] sm:$0xff]
        %v1434 = vld [vmem:[%s1417 + $0x80] sm:$0xff]
        %v1435 = vld [vmem:[%s1417 + $0x88] sm:$0xff]
        %v1436 = vld [vmem:[%s1417 + $0x90] sm:$0xff]
        %v1437 = vld [vmem:[%s1417 + $0x98] sm:$0xff]
        %v1438 = vld [vmem:[%s1417 + $0xa0] sm:$0xff]
        %v1439 = vld [vmem:[%s1417 + $0xa8] sm:$0xff]
        %v1440 = vld [vmem:[%s1417 + $0xb0] sm:$0xff]
        %v1441 = vld [vmem:[%s1417 + $0xb8] sm:$0xff]
        %v1442 = vld [vmem:[%s1417 + $0xc0] sm:$0xff]
        %v1443 = vld [vmem:[%s1417 + $0xc8] sm:$0xff]
        %v1444 = vld [vmem:[%s1417 + $0xd0] sm:$0xff]
        %v1445 = vld [vmem:[%s1417 + $0xd8] sm:$0xff]
        %v1446 = vld [vmem:[%s1417 + $0xe0] sm:$0xff]
        %v1447 = vld [vmem:[%s1417 + $0xe8] sm:$0xff]
        %v1448 = vld [vmem:[%s1417 + $0xf0] sm:$0xff]
        %v1449 = vld [vmem:[%s1417 + $0xf8] sm:$0xff]
        %v1450 = vld [vmem:[%s1417 + $0x100] sm:$0xff]
        %v1451 = vld [vmem:[%s1417 + $0x108] sm:$0xff]
        %v1452 = vld [vmem:[%s1417 + $0x110] sm:$0xff]
        %v1453 = vld [vmem:[%s1417 + $0x118] sm:$0xff]
        %v1454 = vld [vmem:[%s1417 + $0x120] sm:$0xff]
        %v1455 = vld [vmem:[%s1417 + $0x128] sm:$0xff]
        %v1456 = vld [vmem:[%s1417 + $0x130] sm:$0xff]
        %v1457 = vld [vmem:[%s1417 + $0x138] sm:$0xff]
        %v1458 = vld [vmem:[%s1417 + $0x140] sm:$0xff]
        %v1459 = vld [vmem:[%s1417 + $0x148] sm:$0xff]
        %v1460 = vld [vmem:[%s1417 + $0x150] sm:$0xff]
        %v1461 = vld [vmem:[%s1417 + $0x158] sm:$0xff]
        %v1462 = vld [vmem:[%s1417 + $0x160] sm:$0xff]
        %v1463 = vld [vmem:[%s1417 + $0x168] sm:$0xff]
        %v1464 = vld [vmem:[%s1417 + $0x170] sm:$0xff]
        %v1465 = vld [vmem:[%s1417 + $0x178] sm:$0xff]
        %v1466 = vld [vmem:[%s1417 + $0x180] sm:$0xff]
        %v1467 = vld [vmem:[%s1417 + $0x188] sm:$0xff]
        %v1468 = vld [vmem:[%s1417 + $0x190] sm:$0xff]
        %v1469 = vld [vmem:[%s1417 + $0x198] sm:$0xff]
        %v1470 = vld [vmem:[%s1417 + $0x1a0] sm:$0xff]
        %v1471 = vld [vmem:[%s1417 + $0x1a8] sm:$0xff]
        %v1472 = vld [vmem:[%s1417 + $0x1b0] sm:$0xff]
        %v1473 = vld [vmem:[%s1417 + $0x1b8] sm:$0xff]
        %v1474 = vld [vmem:[%s1417 + $0x1c0] sm:$0xff]
        %v1475 = vld [vmem:[%s1417 + $0x1c8] sm:$0xff]
        %v1476 = vld [vmem:[%s1417 + $0x1d0] sm:$0xff]
        %v1477 = vld [vmem:[%s1417 + $0x1d8] sm:$0xff]
        %v1478 = vld [vmem:[%s1417 + $0x1e0] sm:$0xff]
        %v1479 = vld [vmem:[%s1417 + $0x1e8] sm:$0xff]
        %v1480 = vld [vmem:[%s1417 + $0x1f0] sm:$0xff]
        %v1481 = vld [vmem:[%s1417 + $0x1f8] sm:$0xff]
        %s1482 = scalar_lea.vmem [#allocation8], 6
        %v1483 = vld [vmem:[%s1482] sm:$0x3]
        %v1485 = vperm.slane %v1483, 0
        %v1486 = vperm.slane %v1483, 1
        %vm1497 = vcmask 1041409
        %v1498 = vsel %vm1497, %v1411, %v1409
        %vm1499 = vcmask 1042434
        %v1500 = vsel %vm1499, %v1413, %v1498
        %vm1501 = vcmask 1043459
        %v1502 = vsel %vm1501, %v1415, %v1500
        %v1503 = vsel %vm1497, %v1412, %v1410
        %v1504 = vsel %vm1499, %v1414, %v1503
        %v1505 = vsel %vm1501, %v1416, %v1504
        %1508 = vmatpush.msra.mxu0 %v1448
        %1509 = vmatpush.msra.mxu0 %v1446
        %1510 = vmatpush.msra.mxu0 %v1444
        %1511 = vmatpush.msra.mxu0 %v1442
        %1512 = vmatpush.msra.mxu0 %v1440
        %1513 = vmatpush.msra.mxu0 %v1438
        %1514 = vmatpush.msra.mxu0 %v1436
        %1515 = vmatpush.msra.mxu0 %v1434
        %1516 = vmatpush.msra.mxu0 %v1432
        %1517 = vmatpush.msra.mxu0 %v1430
        %1518 = vmatpush.msra.mxu0 %v1428
        %1519 = vmatpush.msra.mxu0 %v1426
        %1520 = vmatpush.msra.mxu0 %v1424
        %1521 = vmatpush.msra.mxu0 %v1422
        %1522 = vmatpush.msra.mxu0 %v1420
        %1523 = vmatpush.msra.mxu0 %v1418
        %1524 = vmatmul.f32.gmra.mxu0 %v1502
        %v1525 = vpop.f32.mrf.mxu0
        %v1526 = vadd.f32 %v1485, %v1525
        %1527 = vdwg.mxu0
        %1528 = vmatpush.msra.mxu0 %v1480
        %1529 = vmatpush.msra.mxu0 %v1478
        %1530 = vmatpush.msra.mxu0 %v1476
        %1531 = vmatpush.msra.mxu0 %v1474
        %1532 = vmatpush.msra.mxu0 %v1472
        %1533 = vmatpush.msra.mxu0 %v1470
        %1534 = vmatpush.msra.mxu0 %v1468
        %1535 = vmatpush.msra.mxu0 %v1466
        %1536 = vmatpush.msra.mxu0 %v1464
        %1537 = vmatpush.msra.mxu0 %v1462
        %1538 = vmatpush.msra.mxu0 %v1460
        %1539 = vmatpush.msra.mxu0 %v1458
        %1540 = vmatpush.msra.mxu0 %v1456
        %1541 = vmatpush.msra.mxu0 %v1454
        %1542 = vmatpush.msra.mxu0 %v1452
        %1543 = vmatpush.msra.mxu0 %v1450
        %1544 = vmatmul.f32.gmra.mxu0 %v1505
        %v1545 = vpop.f32.mrf.mxu0
        %v1546 = vadd.f32 %v1526, %v1545
        %1547 = vdwg.mxu0
        %1548 = vmatpush.msra.mxu0 %v1449
        %1549 = vmatpush.msra.mxu0 %v1447
        %1550 = vmatpush.msra.mxu0 %v1445
        %1551 = vmatpush.msra.mxu0 %v1443
        %1552 = vmatpush.msra.mxu0 %v1441
        %1553 = vmatpush.msra.mxu0 %v1439
        %1554 = vmatpush.msra.mxu0 %v1437
        %1555 = vmatpush.msra.mxu0 %v1435
        %1556 = vmatpush.msra.mxu0 %v1433
        %1557 = vmatpush.msra.mxu0 %v1431
        %1558 = vmatpush.msra.mxu0 %v1429
        %1559 = vmatpush.msra.mxu0 %v1427
        %1560 = vmatpush.msra.mxu0 %v1425
        %1561 = vmatpush.msra.mxu0 %v1423
        %1562 = vmatpush.msra.mxu0 %v1421
        %1563 = vmatpush.msra.mxu0 %v1419
        %1564 = vmatmul.f32.gmra.mxu0 %v1502
        %v1565 = vpop.f32.mrf.mxu0
        %v1566 = vadd.f32 %v1486, %v1565
        %1567 = vdwg.mxu0
        %1568 = vmatpush.msra.mxu0 %v1481
        %1569 = vmatpush.msra.mxu0 %v1479
        %1570 = vmatpush.msra.mxu0 %v1477
        %1571 = vmatpush.msra.mxu0 %v1475
        %1572 = vmatpush.msra.mxu0 %v1473
        %1573 = vmatpush.msra.mxu0 %v1471
        %1574 = vmatpush.msra.mxu0 %v1469
        %1575 = vmatpush.msra.mxu0 %v1467
        %1576 = vmatpush.msra.mxu0 %v1465
        %1577 = vmatpush.msra.mxu0 %v1463
        %1578 = vmatpush.msra.mxu0 %v1461
        %1579 = vmatpush.msra.mxu0 %v1459
        %1580 = vmatpush.msra.mxu0 %v1457
        %1581 = vmatpush.msra.mxu0 %v1455
        %1582 = vmatpush.msra.mxu0 %v1453
        %1583 = vmatpush.msra.mxu0 %v1451
        %1584 = vmatmul.f32.gmra.mxu0 %v1505
        %v1585 = vpop.f32.mrf.mxu0
        %v1586 = vadd.f32 %v1566, %v1585
        %1587 = vdwg.mxu0
        %v1588 = vmax.f32 %v1546, 0.0
        %v1589 = vmax.f32 %v1586, 0.0
        %s1590 = scalar_lea.vmem [#allocation7], 2048
        %v1591 = vld [vmem:[%s1590] sm:$0xff]
        %v1592 = vld [vmem:[%s1590 + $0x8] sm:$0xff]
        %v1593 = vld [vmem:[%s1590 + $0x10] sm:$0xff]
        %v1594 = vld [vmem:[%s1590 + $0x18] sm:$0xff]
        %v1595 = vld [vmem:[%s1590 + $0x20] sm:$0xff]
        %v1596 = vld [vmem:[%s1590 + $0x28] sm:$0xff]
        %v1597 = vld [vmem:[%s1590 + $0x30] sm:$0xff]
        %v1598 = vld [vmem:[%s1590 + $0x38] sm:$0xff]
        %v1599 = vld [vmem:[%s1590 + $0x40] sm:$0xff]
        %v1600 = vld [vmem:[%s1590 + $0x48] sm:$0xff]
        %v1601 = vld [vmem:[%s1590 + $0x50] sm:$0xff]
        %v1602 = vld [vmem:[%s1590 + $0x58] sm:$0xff]
        %v1603 = vld [vmem:[%s1590 + $0x60] sm:$0xff]
        %v1604 = vld [vmem:[%s1590 + $0x68] sm:$0xff]
        %v1605 = vld [vmem:[%s1590 + $0x70] sm:$0xff]
        %v1606 = vld [vmem:[%s1590 + $0x78] sm:$0xff]
        %v1607 = vld [vmem:[%s1590 + $0x80] sm:$0xff]
        %v1608 = vld [vmem:[%s1590 + $0x88] sm:$0xff]
        %v1609 = vld [vmem:[%s1590 + $0x90] sm:$0xff]
        %v1610 = vld [vmem:[%s1590 + $0x98] sm:$0xff]
        %v1611 = vld [vmem:[%s1590 + $0xa0] sm:$0xff]
        %v1612 = vld [vmem:[%s1590 + $0xa8] sm:$0xff]
        %v1613 = vld [vmem:[%s1590 + $0xb0] sm:$0xff]
        %v1614 = vld [vmem:[%s1590 + $0xb8] sm:$0xff]
        %v1615 = vld [vmem:[%s1590 + $0xc0] sm:$0xff]
        %v1616 = vld [vmem:[%s1590 + $0xc8] sm:$0xff]
        %v1617 = vld [vmem:[%s1590 + $0xd0] sm:$0xff]
        %v1618 = vld [vmem:[%s1590 + $0xd8] sm:$0xff]
        %v1619 = vld [vmem:[%s1590 + $0xe0] sm:$0xff]
        %v1620 = vld [vmem:[%s1590 + $0xe8] sm:$0xff]
        %v1621 = vld [vmem:[%s1590 + $0xf0] sm:$0xff]
        %v1622 = vld [vmem:[%s1590 + $0xf8] sm:$0xff]
        %v1623 = vld [vmem:[%s1590 + $0x100] sm:$0xff]
        %v1624 = vld [vmem:[%s1590 + $0x108] sm:$0xff]
        %v1625 = vld [vmem:[%s1590 + $0x110] sm:$0xff]
        %v1626 = vld [vmem:[%s1590 + $0x118] sm:$0xff]
        %v1627 = vld [vmem:[%s1590 + $0x120] sm:$0xff]
        %v1628 = vld [vmem:[%s1590 + $0x128] sm:$0xff]
        %v1629 = vld [vmem:[%s1590 + $0x130] sm:$0xff]
        %v1630 = vld [vmem:[%s1590 + $0x138] sm:$0xff]
        %v1631 = vld [vmem:[%s1590 + $0x140] sm:$0xff]
        %v1632 = vld [vmem:[%s1590 + $0x148] sm:$0xff]
        %v1633 = vld [vmem:[%s1590 + $0x150] sm:$0xff]
        %v1634 = vld [vmem:[%s1590 + $0x158] sm:$0xff]
        %v1635 = vld [vmem:[%s1590 + $0x160] sm:$0xff]
        %v1636 = vld [vmem:[%s1590 + $0x168] sm:$0xff]
        %v1637 = vld [vmem:[%s1590 + $0x170] sm:$0xff]
        %v1638 = vld [vmem:[%s1590 + $0x178] sm:$0xff]
        %v1639 = vld [vmem:[%s1590 + $0x180] sm:$0xff]
        %v1640 = vld [vmem:[%s1590 + $0x188] sm:$0xff]
        %v1641 = vld [vmem:[%s1590 + $0x190] sm:$0xff]
        %v1642 = vld [vmem:[%s1590 + $0x198] sm:$0xff]
        %v1643 = vld [vmem:[%s1590 + $0x1a0] sm:$0xff]
        %v1644 = vld [vmem:[%s1590 + $0x1a8] sm:$0xff]
        %v1645 = vld [vmem:[%s1590 + $0x1b0] sm:$0xff]
        %v1646 = vld [vmem:[%s1590 + $0x1b8] sm:$0xff]
        %v1647 = vld [vmem:[%s1590 + $0x1c0] sm:$0xff]
        %v1648 = vld [vmem:[%s1590 + $0x1c8] sm:$0xff]
        %v1649 = vld [vmem:[%s1590 + $0x1d0] sm:$0xff]
        %v1650 = vld [vmem:[%s1590 + $0x1d8] sm:$0xff]
        %v1651 = vld [vmem:[%s1590 + $0x1e0] sm:$0xff]
        %v1652 = vld [vmem:[%s1590 + $0x1e8] sm:$0xff]
        %v1653 = vld [vmem:[%s1590 + $0x1f0] sm:$0xff]
        %v1654 = vld [vmem:[%s1590 + $0x1f8] sm:$0xff]
        %s1655 = scalar_lea.vmem [#allocation8], 8
        %v1656 = vld [vmem:[%s1655] sm:$0x3]
        %v1658 = vperm.slane %v1656, 0
        %v1659 = vperm.slane %v1656, 1
        %1662 = vmatpush.msra.mxu0 %v1621
        %1663 = vmatpush.msra.mxu0 %v1619
        %1664 = vmatpush.msra.mxu0 %v1617
        %1665 = vmatpush.msra.mxu0 %v1615
        %1666 = vmatpush.msra.mxu0 %v1613
        %1667 = vmatpush.msra.mxu0 %v1611
        %1668 = vmatpush.msra.mxu0 %v1609
        %1669 = vmatpush.msra.mxu0 %v1607
        %1670 = vmatpush.msra.mxu0 %v1605
        %1671 = vmatpush.msra.mxu0 %v1603
        %1672 = vmatpush.msra.mxu0 %v1601
        %1673 = vmatpush.msra.mxu0 %v1599
        %1674 = vmatpush.msra.mxu0 %v1597
        %1675 = vmatpush.msra.mxu0 %v1595
        %1676 = vmatpush.msra.mxu0 %v1593
        %1677 = vmatpush.msra.mxu0 %v1591
        %1678 = vmatmul.f32.gmra.mxu0 %v1588
        %v1679 = vpop.f32.mrf.mxu0
        %v1680 = vadd.f32 %v1658, %v1679
        %1681 = vdwg.mxu0
        %1682 = vmatpush.msra.mxu0 %v1653
        %1683 = vmatpush.msra.mxu0 %v1651
        %1684 = vmatpush.msra.mxu0 %v1649
        %1685 = vmatpush.msra.mxu0 %v1647
        %1686 = vmatpush.msra.mxu0 %v1645
        %1687 = vmatpush.msra.mxu0 %v1643
        %1688 = vmatpush.msra.mxu0 %v1641
        %1689 = vmatpush.msra.mxu0 %v1639
        %1690 = vmatpush.msra.mxu0 %v1637
        %1691 = vmatpush.msra.mxu0 %v1635
        %1692 = vmatpush.msra.mxu0 %v1633
        %1693 = vmatpush.msra.mxu0 %v1631
        %1694 = vmatpush.msra.mxu0 %v1629
        %1695 = vmatpush.msra.mxu0 %v1627
        %1696 = vmatpush.msra.mxu0 %v1625
        %1697 = vmatpush.msra.mxu0 %v1623
        %1698 = vmatmul.f32.gmra.mxu0 %v1589
        %v1699 = vpop.f32.mrf.mxu0
        %v1700 = vadd.f32 %v1680, %v1699
        %1701 = vdwg.mxu0
        %1702 = vmatpush.msra.mxu0 %v1622
        %1703 = vmatpush.msra.mxu0 %v1620
        %1704 = vmatpush.msra.mxu0 %v1618
        %1705 = vmatpush.msra.mxu0 %v1616
        %1706 = vmatpush.msra.mxu0 %v1614
        %1707 = vmatpush.msra.mxu0 %v1612
        %1708 = vmatpush.msra.mxu0 %v1610
        %1709 = vmatpush.msra.mxu0 %v1608
        %1710 = vmatpush.msra.mxu0 %v1606
        %1711 = vmatpush.msra.mxu0 %v1604
        %1712 = vmatpush.msra.mxu0 %v1602
        %1713 = vmatpush.msra.mxu0 %v1600
        %1714 = vmatpush.msra.mxu0 %v1598
        %1715 = vmatpush.msra.mxu0 %v1596
        %1716 = vmatpush.msra.mxu0 %v1594
        %1717 = vmatpush.msra.mxu0 %v1592
        %1718 = vmatmul.f32.gmra.mxu0 %v1588
        %v1719 = vpop.f32.mrf.mxu0
        %v1720 = vadd.f32 %v1659, %v1719
        %1721 = vdwg.mxu0
        %1722 = vmatpush.msra.mxu0 %v1654
        %1723 = vmatpush.msra.mxu0 %v1652
        %1724 = vmatpush.msra.mxu0 %v1650
        %1725 = vmatpush.msra.mxu0 %v1648
        %1726 = vmatpush.msra.mxu0 %v1646
        %1727 = vmatpush.msra.mxu0 %v1644
        %1728 = vmatpush.msra.mxu0 %v1642
        %1729 = vmatpush.msra.mxu0 %v1640
        %1730 = vmatpush.msra.mxu0 %v1638
        %1731 = vmatpush.msra.mxu0 %v1636
        %1732 = vmatpush.msra.mxu0 %v1634
        %1733 = vmatpush.msra.mxu0 %v1632
        %1734 = vmatpush.msra.mxu0 %v1630
        %1735 = vmatpush.msra.mxu0 %v1628
        %1736 = vmatpush.msra.mxu0 %v1626
        %1737 = vmatpush.msra.mxu0 %v1624
        %1738 = vmatmul.f32.gmra.mxu0 %v1589
        %v1739 = vpop.f32.mrf.mxu0
        %v1740 = vadd.f32 %v1720, %v1739
        %1741 = vdwg.mxu0
        %v1742 = vld [vmem:[#allocation10] sm:$0xff]
        %v1743 = vld [vmem:[#allocation10 + $0x8] sm:$0xff]
        %v1744 = vld [vmem:[#allocation10 + $0x10] sm:$0xff]
        %v1745 = vld [vmem:[#allocation10 + $0x18] sm:$0xff]
        %v1746 = vld [vmem:[#allocation10 + $0x20] sm:$0xff]
        %v1747 = vld [vmem:[#allocation10 + $0x28] sm:$0xff]
        %v1748 = vld [vmem:[#allocation10 + $0x30] sm:$0xff]
        %v1749 = vld [vmem:[#allocation10 + $0x38] sm:$0xff]
        %v1750 = vld [vmem:[#allocation10 + $0x40] sm:$0xff]
        %v1751 = vld [vmem:[#allocation10 + $0x48] sm:$0xff]
        %v1752 = vld [vmem:[#allocation10 + $0x50] sm:$0xff]
        %v1753 = vld [vmem:[#allocation10 + $0x58] sm:$0xff]
        %v1754 = vld [vmem:[#allocation10 + $0x60] sm:$0xff]
        %v1755 = vld [vmem:[#allocation10 + $0x68] sm:$0xff]
        %v1756 = vld [vmem:[#allocation10 + $0x70] sm:$0xff]
        %v1757 = vld [vmem:[#allocation10 + $0x78] sm:$0xff]
        %v1758 = vld [vmem:[#allocation10 + $0x80] sm:$0xff]
        %v1759 = vld [vmem:[#allocation10 + $0x88] sm:$0xff]
        %v1760 = vld [vmem:[#allocation10 + $0x90] sm:$0xff]
        %v1761 = vld [vmem:[#allocation10 + $0x98] sm:$0xff]
        %v1762 = vld [vmem:[#allocation10 + $0xa0] sm:$0xff]
        %v1763 = vld [vmem:[#allocation10 + $0xa8] sm:$0xff]
        %v1764 = vld [vmem:[#allocation10 + $0xb0] sm:$0xff]
        %v1765 = vld [vmem:[#allocation10 + $0xb8] sm:$0xff]
        %v1766 = vld [vmem:[#allocation10 + $0xc0] sm:$0xff]
        %v1767 = vld [vmem:[#allocation10 + $0xc8] sm:$0xff]
        %v1768 = vld [vmem:[#allocation10 + $0xd0] sm:$0xff]
        %v1769 = vld [vmem:[#allocation10 + $0xd8] sm:$0xff]
        %v1770 = vld [vmem:[#allocation10 + $0xe0] sm:$0xff]
        %v1771 = vld [vmem:[#allocation10 + $0xe8] sm:$0xff]
        %v1772 = vld [vmem:[#allocation10 + $0xf0] sm:$0xff]
        %v1773 = vld [vmem:[#allocation10 + $0xf8] sm:$0xff]
        %v1774 = vld [vmem:[#allocation13] sm:$0x1]
        %v1776 = vperm.slane %v1774, 0
        %1778 = vmatpush.msra.mxu0 %v1757
        %1779 = vmatpush.msra.mxu0 %v1756
        %1780 = vmatpush.msra.mxu0 %v1755
        %1781 = vmatpush.msra.mxu0 %v1754
        %1782 = vmatpush.msra.mxu0 %v1753
        %1783 = vmatpush.msra.mxu0 %v1752
        %1784 = vmatpush.msra.mxu0 %v1751
        %1785 = vmatpush.msra.mxu0 %v1750
        %1786 = vmatpush.msra.mxu0 %v1749
        %1787 = vmatpush.msra.mxu0 %v1748
        %1788 = vmatpush.msra.mxu0 %v1747
        %1789 = vmatpush.msra.mxu0 %v1746
        %1790 = vmatpush.msra.mxu0 %v1745
        %1791 = vmatpush.msra.mxu0 %v1744
        %1792 = vmatpush.msra.mxu0 %v1743
        %1793 = vmatpush.msra.mxu0 %v1742
        %1794 = vmatmul.f32.gmra.mxu0 %v1700
        %v1795 = vpop.f32.mrf.mxu0
        %v1796 = vadd.f32 %v1776, %v1795
        %1797 = vdwg.mxu0
        %1798 = vmatpush.msra.mxu0 %v1773
        %1799 = vmatpush.msra.mxu0 %v1772
        %1800 = vmatpush.msra.mxu0 %v1771
        %1801 = vmatpush.msra.mxu0 %v1770
        %1802 = vmatpush.msra.mxu0 %v1769
        %1803 = vmatpush.msra.mxu0 %v1768
        %1804 = vmatpush.msra.mxu0 %v1767
        %1805 = vmatpush.msra.mxu0 %v1766
        %1806 = vmatpush.msra.mxu0 %v1765
        %1807 = vmatpush.msra.mxu0 %v1764
        %1808 = vmatpush.msra.mxu0 %v1763
        %1809 = vmatpush.msra.mxu0 %v1762
        %1810 = vmatpush.msra.mxu0 %v1761
        %1811 = vmatpush.msra.mxu0 %v1760
        %1812 = vmatpush.msra.mxu0 %v1759
        %1813 = vmatpush.msra.mxu0 %v1758
        %1814 = vmatmul.f32.gmra.mxu0 %v1740
        %v1815 = vpop.f32.mrf.mxu0
        %v1816 = vadd.f32 %v1796, %v1815
        %1817 = vdwg.mxu0
        %v1818 = vld [vmem:[#allocation11] sm:$0x1]
        %1820 = vset.pattern.permute.xlu0 0
        %1821 = vperm.xlu0 %1820, %v664
        %v1822 = vpop.permute.xlu0 %1821
        %1825 = vset.pattern.permute.xlu0 0
        %1826 = vperm.xlu0 %1825, %v665
        %v1827 = vpop.permute.xlu0 %1826
        %1830 = vset.pattern.permute.xlu0 0
        %1831 = vperm.xlu0 %1830, %v666
        %v1832 = vpop.permute.xlu0 %1831
        %1835 = vset.pattern.permute.xlu0 0
        %1836 = vperm.xlu0 %1835, %v667
        %v1837 = vpop.permute.xlu0 %1836
        %1840 = vset.pattern.permute.xlu0 0
        %1841 = vperm.xlu0 %1840, %v668
        %v1842 = vpop.permute.xlu0 %1841
        %1845 = vset.pattern.permute.xlu0 0
        %1846 = vperm.xlu0 %1845, %v669
        %v1847 = vpop.permute.xlu0 %1846
        %1850 = vset.pattern.permute.xlu0 0
        %1851 = vperm.xlu0 %1850, %v670
        %v1852 = vpop.permute.xlu0 %1851
        %1855 = vset.pattern.permute.xlu0 0
        %1856 = vperm.xlu0 %1855, %v671
        %v1857 = vpop.permute.xlu0 %1856
        %v1860 = vperm.slane %v1818, 0
        %v1862 = vmul.f32 %v1822, %v1860
        %v1863 = vmul.f32 %v1827, %v1860
        %v1864 = vmul.f32 %v1832, %v1860
        %v1865 = vmul.f32 %v1837, %v1860
        %v1866 = vmul.f32 %v1842, %v1860
        %v1867 = vmul.f32 %v1847, %v1860
        %v1868 = vmul.f32 %v1852, %v1860
        %v1869 = vmul.f32 %v1857, %v1860
        %v1871 = vrot.slane %v1816, 1
        %v1872 = vrot.slane %v1816, 2
        %v1873 = vrot.slane %v1816, 3
        %v1874 = vperm.slane %v1816, 0
        %v1875 = vperm.slane %v1871, 0
        %v1876 = vperm.slane %v1872, 0
        %v1877 = vperm.slane %v1873, 0
        %v1882 = vadd.f32 %v1862, %v1874
        %v1883 = vadd.f32 %v1863, %v1874
        %v1884 = vadd.f32 %v1864, %v1875
        %v1885 = vadd.f32 %v1865, %v1875
        %v1886 = vadd.f32 %v1866, %v1876
        %v1887 = vadd.f32 %v1867, %v1876
        %v1888 = vadd.f32 %v1868, %v1877
        %v1889 = vadd.f32 %v1869, %v1877
        %v1890 = vmax.f32 %v1882, 0.0
        %v1891 = vmax.f32 %v1883, 0.0
        %v1892 = vmax.f32 %v1884, 0.0
        %v1893 = vmax.f32 %v1885, 0.0
        %v1894 = vmax.f32 %v1886, 0.0
        %v1895 = vmax.f32 %v1887, 0.0
        %v1896 = vmax.f32 %v1888, 0.0
        %v1897 = vmax.f32 %v1889, 0.0
        %v1898 = vld [vmem:[#allocation14] sm:$0xff]
        %v1899 = vld [vmem:[#allocation14 + $0x8] sm:$0xff]
        %v1900 = vld [vmem:[#allocation14 + $0x10] sm:$0xff]
        %v1901 = vld [vmem:[#allocation14 + $0x18] sm:$0xff]
        %v1902 = vld [vmem:[#allocation14 + $0x20] sm:$0xff]
        %v1903 = vld [vmem:[#allocation14 + $0x28] sm:$0xff]
        %v1904 = vld [vmem:[#allocation14 + $0x30] sm:$0xff]
        %v1905 = vld [vmem:[#allocation14 + $0x38] sm:$0xff]
        %v1906 = vld [vmem:[#allocation14 + $0x40] sm:$0xff]
        %v1907 = vld [vmem:[#allocation14 + $0x48] sm:$0xff]
        %v1908 = vld [vmem:[#allocation14 + $0x50] sm:$0xff]
        %v1909 = vld [vmem:[#allocation14 + $0x58] sm:$0xff]
        %v1910 = vld [vmem:[#allocation14 + $0x60] sm:$0xff]
        %v1911 = vld [vmem:[#allocation14 + $0x68] sm:$0xff]
        %v1912 = vld [vmem:[#allocation14 + $0x70] sm:$0xff]
        %v1913 = vld [vmem:[#allocation14 + $0x78] sm:$0xff]
        %v1914 = vld [vmem:[#allocation16] sm:$0x1]
        %v1916 = vperm.slane %v1914, 0
        %1918 = vmatpush.msra.mxu0 %v1913
        %1919 = vmatpush.msra.mxu0 %v1912
        %1920 = vmatpush.msra.mxu0 %v1911
        %1921 = vmatpush.msra.mxu0 %v1910
        %1922 = vmatpush.msra.mxu0 %v1909
        %1923 = vmatpush.msra.mxu0 %v1908
        %1924 = vmatpush.msra.mxu0 %v1907
        %1925 = vmatpush.msra.mxu0 %v1906
        %1926 = vmatpush.msra.mxu0 %v1905
        %1927 = vmatpush.msra.mxu0 %v1904
        %1928 = vmatpush.msra.mxu0 %v1903
        %1929 = vmatpush.msra.mxu0 %v1902
        %1930 = vmatpush.msra.mxu0 %v1901
        %1931 = vmatpush.msra.mxu0 %v1900
        %1932 = vmatpush.msra.mxu0 %v1899
        %1933 = vmatpush.msra.mxu0 %v1898
        %1934 = vmatmul.f32.gmra.mxu0 %v1890
        %v1935 = vpop.f32.mrf.mxu0
        %v1936 = vadd.f32 %v1916, %v1935
        %1937 = vmatmul.f32.gmra.mxu0 %v1891
        %v1938 = vpop.f32.mrf.mxu0
        %v1939 = vadd.f32 %v1916, %v1938
        %1940 = vmatmul.f32.gmra.mxu0 %v1892
        %v1941 = vpop.f32.mrf.mxu0
        %v1942 = vadd.f32 %v1916, %v1941
        %1943 = vmatmul.f32.gmra.mxu0 %v1893
        %v1944 = vpop.f32.mrf.mxu0
        %v1945 = vadd.f32 %v1916, %v1944
        %1946 = vmatmul.f32.gmra.mxu0 %v1894
        %v1947 = vpop.f32.mrf.mxu0
        %v1948 = vadd.f32 %v1916, %v1947
        %1949 = vmatmul.f32.gmra.mxu0 %v1895
        %v1950 = vpop.f32.mrf.mxu0
        %v1951 = vadd.f32 %v1916, %v1950
        %1952 = vmatmul.f32.gmra.mxu0 %v1896
        %v1953 = vpop.f32.mrf.mxu0
        %v1954 = vadd.f32 %v1916, %v1953
        %1955 = vmatmul.f32.gmra.mxu0 %v1897
        %v1956 = vpop.f32.mrf.mxu0
        %v1957 = vadd.f32 %v1916, %v1956
        %1958 = vdwg.mxu0
        %v1959 = vmax.f32 %v1936, 0.0
        %v1960 = vmax.f32 %v1939, 0.0
        %v1961 = vmax.f32 %v1942, 0.0
        %v1962 = vmax.f32 %v1945, 0.0
        %v1963 = vmax.f32 %v1948, 0.0
        %v1964 = vmax.f32 %v1951, 0.0
        %v1965 = vmax.f32 %v1954, 0.0
        %v1966 = vmax.f32 %v1957, 0.0
        %v1967 = vld [vmem:[%s12] sm:$0xff]
        %v1968 = vld [vmem:[%s12 + $0x8] sm:$0xff]
        %v1969 = vld [vmem:[%s12 + $0x10] sm:$0xff]
        %v1970 = vld [vmem:[%s12 + $0x18] sm:$0xff]
        %v1971 = vld [vmem:[%s12 + $0x20] sm:$0xff]
        %v1972 = vld [vmem:[%s12 + $0x28] sm:$0xff]
        %v1973 = vld [vmem:[%s12 + $0x30] sm:$0xff]
        %v1974 = vld [vmem:[%s12 + $0x38] sm:$0xff]
        %v1975 = vld [vmem:[%s12 + $0x40] sm:$0xff]
        %v1976 = vld [vmem:[%s12 + $0x48] sm:$0xff]
        %v1977 = vld [vmem:[%s12 + $0x50] sm:$0xff]
        %v1978 = vld [vmem:[%s12 + $0x58] sm:$0xff]
        %v1979 = vld [vmem:[%s12 + $0x60] sm:$0xff]
        %v1980 = vld [vmem:[%s12 + $0x68] sm:$0xff]
        %v1981 = vld [vmem:[%s12 + $0x70] sm:$0xff]
        %v1982 = vld [vmem:[%s12 + $0x78] sm:$0xff]
        %v1983 = vld [vmem:[#allocation17] sm:$0x1]
        %v1985 = vperm.slane %v1983, 0
        %1987 = vmatpush.msra.mxu0 %v1982
        %1988 = vmatpush.msra.mxu0 %v1981
        %1989 = vmatpush.msra.mxu0 %v1980
        %1990 = vmatpush.msra.mxu0 %v1979
        %1991 = vmatpush.msra.mxu0 %v1978
        %1992 = vmatpush.msra.mxu0 %v1977
        %1993 = vmatpush.msra.mxu0 %v1976
        %1994 = vmatpush.msra.mxu0 %v1975
        %1995 = vmatpush.msra.mxu0 %v1974
        %1996 = vmatpush.msra.mxu0 %v1973
        %1997 = vmatpush.msra.mxu0 %v1972
        %1998 = vmatpush.msra.mxu0 %v1971
        %1999 = vmatpush.msra.mxu0 %v1970
        %2000 = vmatpush.msra.mxu0 %v1969
        %2001 = vmatpush.msra.mxu0 %v1968
        %2002 = vmatpush.msra.mxu0 %v1967
        %2003 = vmatmul.f32.gmra.mxu0 %v1959
        %v2004 = vpop.f32.mrf.mxu0
        %v2005 = vadd.f32 %v1985, %v2004
        %2006 = vmatmul.f32.gmra.mxu0 %v1960
        %v2007 = vpop.f32.mrf.mxu0
        %v2008 = vadd.f32 %v1985, %v2007
        %2009 = vmatmul.f32.gmra.mxu0 %v1961
        %v2010 = vpop.f32.mrf.mxu0
        %v2011 = vadd.f32 %v1985, %v2010
        %2012 = vmatmul.f32.gmra.mxu0 %v1962
        %v2013 = vpop.f32.mrf.mxu0
        %v2014 = vadd.f32 %v1985, %v2013
        %2015 = vmatmul.f32.gmra.mxu0 %v1963
        %v2016 = vpop.f32.mrf.mxu0
        %v2017 = vadd.f32 %v1985, %v2016
        %2018 = vmatmul.f32.gmra.mxu0 %v1964
        %v2019 = vpop.f32.mrf.mxu0
        %v2020 = vadd.f32 %v1985, %v2019
        %2021 = vmatmul.f32.gmra.mxu0 %v1965
        %v2022 = vpop.f32.mrf.mxu0
        %v2023 = vadd.f32 %v1985, %v2022
        %2024 = vmatmul.f32.gmra.mxu0 %v1966
        %v2025 = vpop.f32.mrf.mxu0
        %v2026 = vadd.f32 %v1985, %v2025
        %2027 = vdwg.mxu0
        %v2028 = vmax.f32 %v2005, 0.0
        %v2029 = vmax.f32 %v2008, 0.0
        %v2030 = vmax.f32 %v2011, 0.0
        %v2031 = vmax.f32 %v2014, 0.0
        %v2032 = vmax.f32 %v2017, 0.0
        %v2033 = vmax.f32 %v2020, 0.0
        %v2034 = vmax.f32 %v2023, 0.0
        %v2035 = vmax.f32 %v2026, 0.0
        %v2036 = vand.u32 2147483647, %v2005
        %v2037 = vand.u32 2147483647, %v2008
        %v2038 = vand.u32 2147483647, %v2011
        %v2039 = vand.u32 2147483647, %v2014
        %v2040 = vand.u32 2147483647, %v2017
        %v2041 = vand.u32 2147483647, %v2020
        %v2042 = vand.u32 2147483647, %v2023
        %v2043 = vand.u32 2147483647, %v2026
        %v2044 = vsub.f32 0.0, %v2036
        %v2045 = vsub.f32 0.0, %v2037
        %v2046 = vsub.f32 0.0, %v2038
        %v2047 = vsub.f32 0.0, %v2039
        %v2048 = vsub.f32 0.0, %v2040
        %v2049 = vsub.f32 0.0, %v2041
        %v2050 = vsub.f32 0.0, %v2042
        %v2051 = vsub.f32 0.0, %v2043
        %v2052 = vmul.f32 %v2044, 1.442695
        %v2053 = vpow.pop %v2052
        %v2054 = vmul.f32 %v2045, 1.442695
        %v2055 = vpow.pop %v2054
        %v2056 = vmul.f32 %v2046, 1.442695
        %v2057 = vpow.pop %v2056
        %v2058 = vmul.f32 %v2047, 1.442695
        %v2059 = vpow.pop %v2058
        %v2060 = vmul.f32 %v2048, 1.442695
        %v2061 = vpow.pop %v2060
        %v2062 = vmul.f32 %v2049, 1.442695
        %v2063 = vpow.pop %v2062
        %v2064 = vmul.f32 %v2050, 1.442695
        %v2065 = vpow.pop %v2064
        %v2066 = vmul.f32 %v2051, 1.442695
        %v2067 = vpow.pop %v2066
        %v2068 = vadd.f32 %v2053, 1.0
        %v2069 = vlog2.pop %v2068
        %v2070 = vmul.f32 %v2069, 0.6931472
        %v2071 = vmul.f32 -0.5, %v2053
        %v2072 = vadd.f32 %v2071, 1.0
        %v2073 = vmul.f32 %v2072, %v2053
        %v2074 = vand.u32 2147483647, %v2053
        %vm2075 = vcmp.lt.f32.partialorder %v2074, 0.0004427343
        %v2076 = vsel %vm2075, %v2073, %v2070
        %v2077 = vadd.f32 %v2055, 1.0
        %v2078 = vlog2.pop %v2077
        %v2079 = vmul.f32 %v2078, 0.6931472
        %v2080 = vmul.f32 -0.5, %v2055
        %v2081 = vadd.f32 %v2080, 1.0
        %v2082 = vmul.f32 %v2081, %v2055
        %v2083 = vand.u32 2147483647, %v2055
        %vm2084 = vcmp.lt.f32.partialorder %v2083, 0.0004427343
        %v2085 = vsel %vm2084, %v2082, %v2079
        %v2086 = vadd.f32 %v2057, 1.0
        %v2087 = vlog2.pop %v2086
        %v2088 = vmul.f32 %v2087, 0.6931472
        %v2089 = vmul.f32 -0.5, %v2057
        %v2090 = vadd.f32 %v2089, 1.0
        %v2091 = vmul.f32 %v2090, %v2057
        %v2092 = vand.u32 2147483647, %v2057
        %vm2093 = vcmp.lt.f32.partialorder %v2092, 0.0004427343
        %v2094 = vsel %vm2093, %v2091, %v2088
        %v2095 = vadd.f32 %v2059, 1.0
        %v2096 = vlog2.pop %v2095
        %v2097 = vmul.f32 %v2096, 0.6931472
        %v2098 = vmul.f32 -0.5, %v2059
        %v2099 = vadd.f32 %v2098, 1.0
        %v2100 = vmul.f32 %v2099, %v2059
        %v2101 = vand.u32 2147483647, %v2059
        %vm2102 = vcmp.lt.f32.partialorder %v2101, 0.0004427343
        %v2103 = vsel %vm2102, %v2100, %v2097
        %v2104 = vadd.f32 %v2061, 1.0
        %v2105 = vlog2.pop %v2104
        %v2106 = vmul.f32 %v2105, 0.6931472
        %v2107 = vmul.f32 -0.5, %v2061
        %v2108 = vadd.f32 %v2107, 1.0
        %v2109 = vmul.f32 %v2108, %v2061
        %v2110 = vand.u32 2147483647, %v2061
        %vm2111 = vcmp.lt.f32.partialorder %v2110, 0.0004427343
        %v2112 = vsel %vm2111, %v2109, %v2106
        %v2113 = vadd.f32 %v2063, 1.0
        %v2114 = vlog2.pop %v2113
        %v2115 = vmul.f32 %v2114, 0.6931472
        %v2116 = vmul.f32 -0.5, %v2063
        %v2117 = vadd.f32 %v2116, 1.0
        %v2118 = vmul.f32 %v2117, %v2063
        %v2119 = vand.u32 2147483647, %v2063
        %vm2120 = vcmp.lt.f32.partialorder %v2119, 0.0004427343
        %v2121 = vsel %vm2120, %v2118, %v2115
        %v2122 = vadd.f32 %v2065, 1.0
        %v2123 = vlog2.pop %v2122
        %v2124 = vmul.f32 %v2123, 0.6931472
        %v2125 = vmul.f32 -0.5, %v2065
        %v2126 = vadd.f32 %v2125, 1.0
        %v2127 = vmul.f32 %v2126, %v2065
        %v2128 = vand.u32 2147483647, %v2065
        %vm2129 = vcmp.lt.f32.partialorder %v2128, 0.0004427343
        %v2130 = vsel %vm2129, %v2127, %v2124
        %v2131 = vadd.f32 %v2067, 1.0
        %v2132 = vlog2.pop %v2131
        %v2133 = vmul.f32 %v2132, 0.6931472
        %v2134 = vmul.f32 -0.5, %v2067
        %v2135 = vadd.f32 %v2134, 1.0
        %v2136 = vmul.f32 %v2135, %v2067
        %v2137 = vand.u32 2147483647, %v2067
        %vm2138 = vcmp.lt.f32.partialorder %v2137, 0.0004427343
        %v2139 = vsel %vm2138, %v2136, %v2133
        %v2140 = vadd.f32 %v2028, %v2076
        %v2141 = vadd.f32 %v2029, %v2085
        %v2142 = vadd.f32 %v2030, %v2094
        %v2143 = vadd.f32 %v2031, %v2103
        %v2144 = vadd.f32 %v2032, %v2112
        %v2145 = vadd.f32 %v2033, %v2121
        %v2146 = vadd.f32 %v2034, %v2130
        %v2147 = vadd.f32 %v2035, %v2139
        %v2148 = vmul.f32 %v2140, 0.9
        %v2149 = vmul.f32 %v2141, 0.9
        %v2150 = vmul.f32 %v2142, 0.9
        %v2151 = vmul.f32 %v2143, 0.9
        %v2152 = vmul.f32 %v2144, 0.9
        %v2153 = vmul.f32 %v2145, 0.9
        %v2154 = vmul.f32 %v2146, 0.9
        %v2155 = vmul.f32 %v2147, 0.9
        %v2156 = vadd.f32 %v2148, 0.1
        %v2157 = vadd.f32 %v2149, 0.1
        %v2158 = vadd.f32 %v2150, 0.1
        %v2159 = vadd.f32 %v2151, 0.1
        %v2160 = vadd.f32 %v2152, 0.1
        %v2161 = vadd.f32 %v2153, 0.1
        %v2162 = vadd.f32 %v2154, 0.1
        %v2163 = vadd.f32 %v2155, 0.1
        %v2164 = vsub.f32 %v672, %v2005
        %v2165 = vsub.f32 %v673, %v2008
        %v2166 = vsub.f32 %v674, %v2011
        %v2167 = vsub.f32 %v675, %v2014
        %v2168 = vsub.f32 %v676, %v2017
        %v2169 = vsub.f32 %v677, %v2020
        %v2170 = vsub.f32 %v678, %v2023
        %v2171 = vsub.f32 %v679, %v2026
        %2180 = vrot.lane.b32.xlu0 %v2156, 127
        %v2181 = vpop.permute.xlu0 %2180
        %2182 = vrot.lane.b32.xlu0 %v2157, 127
        %v2183 = vpop.permute.xlu0 %2182
        %2184 = vrot.lane.b32.xlu0 %v2158, 127
        %v2185 = vpop.permute.xlu0 %2184
        %2186 = vrot.lane.b32.xlu0 %v2159, 127
        %v2187 = vpop.permute.xlu0 %2186
        %2188 = vrot.lane.b32.xlu0 %v2160, 127
        %v2189 = vpop.permute.xlu0 %2188
        %2190 = vrot.lane.b32.xlu0 %v2161, 127
        %v2191 = vpop.permute.xlu0 %2190
        %2192 = vrot.lane.b32.xlu0 %v2162, 127
        %v2193 = vpop.permute.xlu0 %2192
        %2194 = vrot.lane.b32.xlu0 %v2163, 127
        %v2195 = vpop.permute.xlu0 %2194
        %v2204 = vrcp.pop %v2181
        %v2205 = vmul.f32 %v2181, %v2204
        %v2206 = vsub.f32 1.0, %v2205
        %v2207 = vmul.f32 %v2204, %v2206
        %v2208 = vadd.f32 %v2204, %v2207
        %vm2209 = vweird.f32 %v2181
        %vm2210 = vweird.f32 %v2204
        %vm2211 = vmor %vm2209, %vm2210
        %v2212 = vsel %vm2211, %v2204, %v2208
        %v2213 = vand.u32 2147483647, %v2181
        %vm2214 = vcmp.eq.f32.partialorder %v2213, 8.507059e+37
        %v2215 = vand.u32 %v2181, 2147483648
        %v2216 = vor.u32 1.1754944e-38, %v2215
        %v2217 = vsel %vm2214, %v2216, %v2212
        %v2218 = vmul.f32 %v2164, %v2217
        %v2219 = vrcp.pop %v2183
        %v2220 = vmul.f32 %v2183, %v2219
        %v2221 = vsub.f32 1.0, %v2220
        %v2222 = vmul.f32 %v2219, %v2221
        %v2223 = vadd.f32 %v2219, %v2222
        %vm2224 = vweird.f32 %v2183
        %vm2225 = vweird.f32 %v2219
        %vm2226 = vmor %vm2224, %vm2225
        %v2227 = vsel %vm2226, %v2219, %v2223
        %v2228 = vand.u32 2147483647, %v2183
        %vm2229 = vcmp.eq.f32.partialorder %v2228, 8.507059e+37
        %v2230 = vand.u32 %v2183, 2147483648
        %v2231 = vor.u32 1.1754944e-38, %v2230
        %v2232 = vsel %vm2229, %v2231, %v2227
        %v2233 = vmul.f32 %v2165, %v2232
        %v2234 = vrcp.pop %v2185
        %v2235 = vmul.f32 %v2185, %v2234
        %v2236 = vsub.f32 1.0, %v2235
        %v2237 = vmul.f32 %v2234, %v2236
        %v2238 = vadd.f32 %v2234, %v2237
        %vm2239 = vweird.f32 %v2185
        %vm2240 = vweird.f32 %v2234
        %vm2241 = vmor %vm2239, %vm2240
        %v2242 = vsel %vm2241, %v2234, %v2238
        %v2243 = vand.u32 2147483647, %v2185
        %vm2244 = vcmp.eq.f32.partialorder %v2243, 8.507059e+37
        %v2245 = vand.u32 %v2185, 2147483648
        %v2246 = vor.u32 1.1754944e-38, %v2245
        %v2247 = vsel %vm2244, %v2246, %v2242
        %v2248 = vmul.f32 %v2166, %v2247
        %v2249 = vrcp.pop %v2187
        %v2250 = vmul.f32 %v2187, %v2249
        %v2251 = vsub.f32 1.0, %v2250
        %v2252 = vmul.f32 %v2249, %v2251
        %v2253 = vadd.f32 %v2249, %v2252
        %vm2254 = vweird.f32 %v2187
        %vm2255 = vweird.f32 %v2249
        %vm2256 = vmor %vm2254, %vm2255
        %v2257 = vsel %vm2256, %v2249, %v2253
        %v2258 = vand.u32 2147483647, %v2187
        %vm2259 = vcmp.eq.f32.partialorder %v2258, 8.507059e+37
        %v2260 = vand.u32 %v2187, 2147483648
        %v2261 = vor.u32 1.1754944e-38, %v2260
        %v2262 = vsel %vm2259, %v2261, %v2257
        %v2263 = vmul.f32 %v2167, %v2262
        %v2264 = vrcp.pop %v2189
        %v2265 = vmul.f32 %v2189, %v2264
        %v2266 = vsub.f32 1.0, %v2265
        %v2267 = vmul.f32 %v2264, %v2266
        %v2268 = vadd.f32 %v2264, %v2267
        %vm2269 = vweird.f32 %v2189
        %vm2270 = vweird.f32 %v2264
        %vm2271 = vmor %vm2269, %vm2270
        %v2272 = vsel %vm2271, %v2264, %v2268
        %v2273 = vand.u32 2147483647, %v2189
        %vm2274 = vcmp.eq.f32.partialorder %v2273, 8.507059e+37
        %v2275 = vand.u32 %v2189, 2147483648
        %v2276 = vor.u32 1.1754944e-38, %v2275
        %v2277 = vsel %vm2274, %v2276, %v2272
        %v2278 = vmul.f32 %v2168, %v2277
        %v2279 = vrcp.pop %v2191
        %v2280 = vmul.f32 %v2191, %v2279
        %v2281 = vsub.f32 1.0, %v2280
        %v2282 = vmul.f32 %v2279, %v2281
        %v2283 = vadd.f32 %v2279, %v2282
        %vm2284 = vweird.f32 %v2191
        %vm2285 = vweird.f32 %v2279
        %vm2286 = vmor %vm2284, %vm2285
        %v2287 = vsel %vm2286, %v2279, %v2283
        %v2288 = vand.u32 2147483647, %v2191
        %vm2289 = vcmp.eq.f32.partialorder %v2288, 8.507059e+37
        %v2290 = vand.u32 %v2191, 2147483648
        %v2291 = vor.u32 1.1754944e-38, %v2290
        %v2292 = vsel %vm2289, %v2291, %v2287
        %v2293 = vmul.f32 %v2169, %v2292
        %v2294 = vrcp.pop %v2193
        %v2295 = vmul.f32 %v2193, %v2294
        %v2296 = vsub.f32 1.0, %v2295
        %v2297 = vmul.f32 %v2294, %v2296
        %v2298 = vadd.f32 %v2294, %v2297
        %vm2299 = vweird.f32 %v2193
        %vm2300 = vweird.f32 %v2294
        %vm2301 = vmor %vm2299, %vm2300
        %v2302 = vsel %vm2301, %v2294, %v2298
        %v2303 = vand.u32 2147483647, %v2193
        %vm2304 = vcmp.eq.f32.partialorder %v2303, 8.507059e+37
        %v2305 = vand.u32 %v2193, 2147483648
        %v2306 = vor.u32 1.1754944e-38, %v2305
        %v2307 = vsel %vm2304, %v2306, %v2302
        %v2308 = vmul.f32 %v2170, %v2307
        %v2309 = vrcp.pop %v2195
        %v2310 = vmul.f32 %v2195, %v2309
        %v2311 = vsub.f32 1.0, %v2310
        %v2312 = vmul.f32 %v2309, %v2311
        %v2313 = vadd.f32 %v2309, %v2312
        %vm2314 = vweird.f32 %v2195
        %vm2315 = vweird.f32 %v2309
        %vm2316 = vmor %vm2314, %vm2315
        %v2317 = vsel %vm2316, %v2309, %v2313
        %v2318 = vand.u32 2147483647, %v2195
        %vm2319 = vcmp.eq.f32.partialorder %v2318, 8.507059e+37
        %v2320 = vand.u32 %v2195, 2147483648
        %v2321 = vor.u32 1.1754944e-38, %v2320
        %v2322 = vsel %vm2319, %v2321, %v2317
        %v2323 = vmul.f32 %v2171, %v2322
        %v2324 = vmul.f32 %v2218, -0.5
        %v2325 = vmul.f32 %v2233, -0.5
        %v2326 = vmul.f32 %v2248, -0.5
        %v2327 = vmul.f32 %v2263, -0.5
        %v2328 = vmul.f32 %v2278, -0.5
        %v2329 = vmul.f32 %v2293, -0.5
        %v2330 = vmul.f32 %v2308, -0.5
        %v2331 = vmul.f32 %v2323, -0.5
        %v2332 = vmul.f32 %v2324, %v2218
        %v2333 = vmul.f32 %v2325, %v2233
        %v2334 = vmul.f32 %v2326, %v2248
        %v2335 = vmul.f32 %v2327, %v2263
        %v2336 = vmul.f32 %v2328, %v2278
        %v2337 = vmul.f32 %v2329, %v2293
        %v2338 = vmul.f32 %v2330, %v2308
        %v2339 = vmul.f32 %v2331, %v2323
        %v2340 = vlog2.pop %v2156
        %v2341 = vmul.f32 %v2340, 0.6931472
        %v2342 = vlog2.pop %v2157
        %v2343 = vmul.f32 %v2342, 0.6931472
        %v2344 = vlog2.pop %v2158
        %v2345 = vmul.f32 %v2344, 0.6931472
        %v2346 = vlog2.pop %v2159
        %v2347 = vmul.f32 %v2346, 0.6931472
        %v2348 = vlog2.pop %v2160
        %v2349 = vmul.f32 %v2348, 0.6931472
        %v2350 = vlog2.pop %v2161
        %v2351 = vmul.f32 %v2350, 0.6931472
        %v2352 = vlog2.pop %v2162
        %v2353 = vmul.f32 %v2352, 0.6931472
        %v2354 = vlog2.pop %v2163
        %v2355 = vmul.f32 %v2354, 0.6931472
        %2364 = vrot.lane.b32.xlu0 %v2341, 127
        %v2365 = vpop.permute.xlu0 %2364
        %2366 = vrot.lane.b32.xlu0 %v2343, 127
        %v2367 = vpop.permute.xlu0 %2366
        %2368 = vrot.lane.b32.xlu0 %v2345, 127
        %v2369 = vpop.permute.xlu0 %2368
        %2370 = vrot.lane.b32.xlu0 %v2347, 127
        %v2371 = vpop.permute.xlu0 %2370
        %2372 = vrot.lane.b32.xlu0 %v2349, 127
        %v2373 = vpop.permute.xlu0 %2372
        %2374 = vrot.lane.b32.xlu0 %v2351, 127
        %v2375 = vpop.permute.xlu0 %2374
        %2376 = vrot.lane.b32.xlu0 %v2353, 127
        %v2377 = vpop.permute.xlu0 %2376
        %2378 = vrot.lane.b32.xlu0 %v2355, 127
        %v2379 = vpop.permute.xlu0 %2378
        %v2388 = vsub.f32 %v2332, %v2365
        %v2389 = vsub.f32 %v2333, %v2367
        %v2390 = vsub.f32 %v2334, %v2369
        %v2391 = vsub.f32 %v2335, %v2371
        %v2392 = vsub.f32 %v2336, %v2373
        %v2393 = vsub.f32 %v2337, %v2375
        %v2394 = vsub.f32 %v2338, %v2377
        %v2395 = vsub.f32 %v2339, %v2379
        %v2396 = vsub.f32 %v2388, 0.9189385
        %v2397 = vsub.f32 %v2389, 0.9189385
        %v2398 = vsub.f32 %v2390, 0.9189385
        %v2399 = vsub.f32 %v2391, 0.9189385
        %v2400 = vsub.f32 %v2392, 0.9189385
        %v2401 = vsub.f32 %v2393, 0.9189385
        %v2402 = vsub.f32 %v2394, 0.9189385
        %v2403 = vsub.f32 %v2395, 0.9189385
        %v2404 = vadd.f32 %v2396, 0.0
        %v2405 = vadd.f32 %v2397, 0.0
        %v2406 = vadd.f32 %v2398, 0.0
        %v2407 = vadd.f32 %v2399, 0.0
        %v2408 = vadd.f32 %v2400, 0.0
        %v2409 = vadd.f32 %v2401, 0.0
        %v2410 = vadd.f32 %v2402, 0.0
        %v2411 = vadd.f32 %v2403, 0.0
        %2420 = vset.pattern.permute.xlu0 0
        %2421 = vperm.xlu0 %2420, %v2404
        %v2422 = vpop.permute.xlu0 %2421
        %2423 = vset.pattern.permute.xlu0 0
        %2424 = vperm.xlu0 %2423, %v2405
        %v2425 = vpop.permute.xlu0 %2424
        %2426 = vset.pattern.permute.xlu0 0
        %2427 = vperm.xlu0 %2426, %v2406
        %v2428 = vpop.permute.xlu0 %2427
        %2429 = vset.pattern.permute.xlu0 0
        %2430 = vperm.xlu0 %2429, %v2407
        %v2431 = vpop.permute.xlu0 %2430
        %2432 = vset.pattern.permute.xlu0 0
        %2433 = vperm.xlu0 %2432, %v2408
        %v2434 = vpop.permute.xlu0 %2433
        %2435 = vset.pattern.permute.xlu0 0
        %2436 = vperm.xlu0 %2435, %v2409
        %v2437 = vpop.permute.xlu0 %2436
        %2438 = vset.pattern.permute.xlu0 0
        %2439 = vperm.xlu0 %2438, %v2410
        %v2440 = vpop.permute.xlu0 %2439
        %2441 = vset.pattern.permute.xlu0 0
        %2442 = vperm.xlu0 %2441, %v2411
        %v2443 = vpop.permute.xlu0 %2442
        %v2444 = vlaneseq
        %v2445 = vand.u32 %v2444, 127
        %v2446 = vperm.slane %v2422, %v2445
        %v2447 = vadd.s32 %v2445, 4294967288
        %v2448 = vperm.slane %v2425, %v2447
        %vm2449 = vcmask 130112
        %v2450 = vsel %vm2449, %v2448, %v2446
        %v2451 = vperm.slane %v2428, %v2445
        %v2452 = vperm.slane %v2431, %v2447
        %v2453 = vsel %vm2449, %v2452, %v2451
        %v2454 = vperm.slane %v2434, %v2445
        %v2455 = vperm.slane %v2437, %v2447
        %v2456 = vsel %vm2449, %v2455, %v2454
        %v2457 = vperm.slane %v2440, %v2445
        %v2458 = vperm.slane %v2443, %v2447
        %v2459 = vsel %vm2449, %v2458, %v2457
        %v2460 = vsel %vm1497, %v2453, %v2450
        %v2461 = vsel %vm1499, %v2456, %v2460
        %v2462 = vsel %vm1501, %v2459, %v2461
        %vm2464 = vcmask 125952
        %2465 = vst.msk [vmem:[%s644] sm:$0xf] %vm2464, %v2462
        %s2466 = sand.u32 %s351, 1
        %s2467 = scalar_lea.sflag [#allocation4], %s2466
        %s2468 = sand.u32 %s351, 1
        %s2469 = smul.addr %s2468, 4
        %s2470 = scalar_lea.vmem [#allocation19], %s2469
        // Predicated region
        $region117: #{tpu_custom_call.1} parent=75 // pred_check
          %p2471 = pneg %p361
        $region118: #{tpu_custom_call.1} parent=75 // pred_check_branch
          %2473 = sbr.rel (%p2471) target = $region120
        $region119: #{tpu_custom_call.1} parent=75 // pred_region
          %2475 = vsyncadd %s2467, 0
          %s2476 = smul.addr %s34, 4
          %s2477 = scalar_lea.hbm %s14, %s2476
          %s2479 = sshll.u32 %s2470, 4
          %s2480 = int_to_ptr.vmem [resolvable:$true] %s2479
          %s2481 = sshll.u32 %s2477, 4
          %s2482 = int_to_ptr.hbm [resolvable:$true] %s2481
          %2484 = dma.vmem_to_hbm [thread:$0]  %s2480, 64, %s2482, %s2467
        $region120: #{tpu_custom_call.1} parent=75 // pred_fallthru
          _
      $region76: #{tpu_custom_call.1} parent=5 // pred_fallthru
        _
      %p2485 = scmp.le.s32.totalorder 2, %s29
      // Predicated region
      $region121: #{tpu_custom_call.1} parent=5 // pred_check
        %p2486 = pneg %p2485
      $region122: #{tpu_custom_call.1} parent=5 // pred_check_branch
        %2488 = sbr.rel (%p2486) target = $region124
      $region123: #{tpu_custom_call.1} parent=5 // pred_region
        %s2489 = ssub.s32 %s29, 2
        // Predicated region
        $region125: #{tpu_custom_call.1} parent=123 // pred_check
          %p2490 = pneg %p367
        $region126: #{tpu_custom_call.1} parent=123 // pred_check_branch
          %2492 = sbr.rel (%p2490) target = $region128
        $region127: #{tpu_custom_call.1} parent=123 // pred_region
          %s2493 = sand.u32 %s352, 1
          %s2494 = scalar_lea.sflag [#allocation4], %s2493
          %s2495 = sand.u32 %s352, 1
          %s2496 = smul.addr %s2495, 4
          %s2497 = scalar_lea.vmem [#allocation19], %s2496
          %2499 = dma.done %s2494, 64
        $region128: #{tpu_custom_call.1} parent=123 // pred_fallthru
          _
      $region124: #{tpu_custom_call.1} parent=5 // pred_fallthru
        _
    $region6: #{tpu_custom_call.1} parent=1 // loop_footer
      %s33 = sadd.s32 1, %s29
    $region7: #{tpu_custom_call.1} parent=1 // loop_footer_branch
      %28 = sbr.rel target = $region3
    $region8: #{tpu_custom_call.1} parent=1 // loop_exit
      _
    %2500 = vsyncpa [#allocation3], 1
    %s2501 = scalar_lea.sflag [#allocation3], 1
    %2502 = vsyncpa %s2501, 1
    %2503 = vsyncpa [#allocation6], 1
    %2504 = vsyncpa [#allocation9], 1
    %2505 = vsyncpa [#allocation12], 1
    %2506 = vsyncpa [#allocation15], 1
    %2507 = vsyncpa [#allocation18], 1
    %2508 = vsyncpa [#allocation4], 1
    %s2509 = scalar_lea.sflag [#allocation4], 1
    %2510 = vsyncpa %s2509, 1

</llo_original>
